<compile_context>
chip_gen: v7x
topology: tpu7x:2x2x1
jax: 0.10.0
libtpu: 0.0.40
codegen_flags: <defaults>
</compile_context>

<pallas_src>
import functools

import numpy as np

import jax
import jax.numpy as jnp
from jax.experimental import pallas as pl
from jax.experimental.pallas import tpu as pltpu


# ----------------------------------------------------------------------------
# Bilinear x2 interpolation matrix (PyTorch align_corners=False convention).
# Columns are the 2W output positions in natural (already interleaved) order,
# so one matmul performs W-interpolation *and* even/odd column interleaving.
# ----------------------------------------------------------------------------
def _bilinear_x2_matrix(in_size: int) -> np.ndarray:
    out_size = 2 * in_size
    mat = np.zeros((in_size, out_size), np.float32)
    for v in range(out_size):
        src = (v + 0.5) / 2.0 - 0.5
        src = min(max(src, 0.0), float(in_size - 1))
        i0 = int(np.floor(src))
        i1 = min(i0 + 1, in_size - 1)
        frac = src - i0
        mat[i0, v] += 1.0 - frac
        mat[i1, v] += frac
    return mat


# ----------------------------------------------------------------------------
# Fused kernel.  Grid = (batch, H tile).
#   x_ref : (1, Cin, H, W)        whole low-res input of this batch element
#   y_ref : (1, Cout, th, 4W)     skip tile; row h holds out rows 2h | 2h+1
#   wc_ref: (Cout, Cin)           1x1 conv weight (f32)
#   wk_ref: (Cout*r, Cin*r)       block-diagonal kron(Wc, I_r) weight (f32)
#   aw_ref: (W, 2W)               bilinear x2 (+interleave) matrix (f32)
#   o_ref : (1, Cout, th, 4W)     output tile (same (H,4W) view as y)
# ----------------------------------------------------------------------------
def _skip_upsample_kernel(x_ref, y_ref, wc_ref, wk_ref, aw_ref, o_ref):
    _, cin, h_lo, w_lo = x_ref.shape
    _, cout, th, _ = y_ref.shape
    r = wk_ref.shape[0] // cout            # rows convolved per MXU matmul
    w2 = 2 * w_lo

    row0 = pl.multiple_of(pl.program_id(1) * th, th)
    prev_row = jnp.maximum(row0 - 1, 0)            # 1-row halo above (clamped)
    next_row = jnp.minimum(row0 + th, h_lo - 1)    # 1-row halo below (clamped)

    wc = wc_ref[...]
    wk = wk_ref[...]

    # ---- 1x1 conv at LOW resolution (commutes with the bilinear upsample).
    # Halo rows: two tiny (Cout,Cin)@(Cin,W) dots.  Center rows: r at a time
    # with the block-diagonal weight -> (Cout*r, Cin*r)@(Cin*r, W); the
    # (Cin, r, W)->(Cin*r, W) and (Cout*r, W)->(Cout, r, W) reshapes only
    # merge/split leading dims (free, no relayout).
    pieces = []
    xp = x_ref[0, :, pl.ds(prev_row, 1), :].reshape(cin, w_lo).astype(jnp.float32)
    pieces.append(jnp.dot(wc, xp, preferred_element_type=jnp.float32)
                  .reshape(cout, 1, w_lo))
    for g in range(th // r):
        xg = x_ref[0, :, pl.ds(row0 + g * r, r), :].astype(jnp.float32)
        tg = jnp.dot(wk, xg.reshape(cin * r, w_lo),
                     preferred_element_type=jnp.float32)
        pieces.append(tg.reshape(cout, r, w_lo))
    xn = x_ref[0, :, pl.ds(next_row, 1), :].reshape(cin, w_lo).astype(jnp.float32)
    pieces.append(jnp.dot(wc, xn, preferred_element_type=jnp.float32)
                  .reshape(cout, 1, w_lo))
    t_ext = jnp.concatenate(pieces, axis=1)        # (Cout, th+2, W)

    # ---- bilinear x2 along H (align_corners=False); halo rows give the
    # edge-replication clamp and the cross-tile neighbours.
    r_even = 0.25 * t_ext[:, 0:th, :] + 0.75 * t_ext[:, 1:th + 1, :]
    r_odd = 0.75 * t_ext[:, 1:th + 1, :] + 0.25 * t_ext[:, 2:th + 2, :]

    # ---- bilinear x2 along W + column interleave: ONE stacked MXU matmul
    # over both row parities (even rows on top, odd rows below).
    rs = jnp.concatenate([r_even.reshape(cout * th, w_lo),
                          r_odd.reshape(cout * th, w_lo)], axis=0)
    u = jnp.dot(rs, aw_ref[...], preferred_element_type=jnp.float32)
    u_even = u[0:cout * th, :].reshape(cout, th, w2)
    u_odd = u[cout * th:, :].reshape(cout, th, w2)

    # ---- skip connection + per-lane-half stores (even rows in lanes [0,2W),
    # odd rows in [2W,4W)); unmasked whenever 2W % 128 == 0.
    o_ref[0, :, :, 0:w2] = (
        u_even + y_ref[0, :, :, 0:w2].astype(jnp.float32)).astype(o_ref.dtype)
    o_ref[0, :, :, w2:] = (
        u_odd + y_ref[0, :, :, w2:].astype(jnp.float32)).astype(o_ref.dtype)


def _pick_tile_h(h: int) -> int:
    if h <= 32:
        return h
    for cand in (32, 16, 8):
        if h % cand == 0:
            return cand
    return h                                       # fallback: whole image


# ----------------------------------------------------------------------------
# Wrapper: native-dtype I/O, free (row-major compatible) reshapes only.
# ----------------------------------------------------------------------------
@functools.partial(jax.jit, static_argnames=("tile_h",))
def skip_upsample_forward(x, y, w_conv, *, tile_h=None):
    """x: (N, Cin, H, W); y: (N, Cout, 2H, 2W); w_conv: (Cout, Cin, 1, 1)."""
    n, cin, h, w = x.shape
    cout = w_conv.shape[0]
    assert y.shape == (n, cout, 2 * h, 2 * w)

    th = _pick_tile_h(h) if tile_h is None else int(tile_h)
    assert h % th == 0 and (th % 8 == 0 or th == h), (h, th)
    n_th = h // th
    r = 8 if th % 8 == 0 else th

    # (N, Cout, 2H, 2W) -> (N, Cout, H, 4W): row-major compatible => free.
    y4 = y.reshape(n, cout, h, 4 * w)

    wc = w_conv.reshape(cout, cin).astype(jnp.float32)
    # Block-diagonal conv weight: convolves r rows per matmul with M=Cout*r,
    # K=Cin*r, keeping the kernel free of NCHW->NHWC transposes / lane merges.
    wk = jnp.kron(wc, jnp.eye(r, dtype=jnp.float32))
    aw = jnp.asarray(_bilinear_x2_matrix(w))

    # Explicit VMEM budget: x whole per batch (double-buffered) + y/out tiles
    # (double-buffered) + f32 intermediates + small weight matrices.
    x_blk = cin * h * w * jnp.dtype(x.dtype).itemsize
    y_blk = cout * th * 4 * w * jnp.dtype(y.dtype).itemsize
    interm = 4 * (th + 2) * w * (cin + 10 * cout) + 4 * wk.size + 4 * aw.size
    vmem_limit = int(min(96 * 2**20,
                         max(32 * 2**20,
                             2 * x_blk + 4 * y_blk + interm + (4 << 20))))

    out = pl.pallas_call(
        _skip_upsample_kernel,
        out_shape=jax.ShapeDtypeStruct((n, cout, h, 4 * w), y.dtype),
        grid=(n, n_th),
        in_specs=[
            pl.BlockSpec((1, cin, h, w), lambda i, j: (i, 0, 0, 0)),
            pl.BlockSpec((1, cout, th, 4 * w), lambda i, j: (i, 0, j, 0)),
            pl.BlockSpec((cout, cin), lambda i, j: (0, 0)),
            pl.BlockSpec(wk.shape, lambda i, j: (0, 0)),
            pl.BlockSpec((w, 2 * w), lambda i, j: (0, 0)),
        ],
        out_specs=pl.BlockSpec((1, cout, th, 4 * w), lambda i, j: (i, 0, j, 0)),
        compiler_params=pltpu.CompilerParams(
            dimension_semantics=("parallel", "parallel"),
            vmem_limit_bytes=vmem_limit),
    )(x, y4, wc, wk, aw)

    return out.reshape(n, cout, 2 * h, 2 * w)      # free reshape back


# ----------------------------------------------------------------------------
# Pure-JAX reference in the original op order (upsample -> conv -> add).
# ----------------------------------------------------------------------------
def _upsample_bilinear_x2_ref(x):
    n, c, h, w = x.shape

    def coords(in_size):
        out = jnp.arange(2 * in_size, dtype=jnp.float32)
        src = jnp.clip((out + 0.5) / 2.0 - 0.5, 0.0, float(in_size - 1))
        i0 = jnp.floor(src).astype(jnp.int32)
        i1 = jnp.minimum(i0 + 1, in_size - 1)
        frac = src - i0.astype(jnp.float32)
        return i0, i1, frac

    h0, h1, fh = coords(h)
    w0, w1, fw = coords(w)
    xh = (x[:, :, h0, :] * (1.0 - fh)[None, None, :, None]
          + x[:, :, h1, :] * fh[None, None, :, None])
    return (xh[:, :, :, w0] * (1.0 - fw)[None, None, None, :]
            + xh[:, :, :, w1] * fw[None, None, None, :])


def skip_upsample_reference(x, y, w_conv):
    cout, cin = w_conv.shape[0], w_conv.shape[1]
    up = _upsample_bilinear_x2_ref(x.astype(jnp.float32))
    conv = jnp.einsum("nchw,oc->nohw", up,
                      w_conv.reshape(cout, cin).astype(jnp.float32))
    return conv + y.astype(jnp.float32)


if __name__ == "__main__":
    # SkipUpSample(in_channels=16, s_factor=16):
    #   x: (N, in_channels + s_factor, H, W), y: (N, in_channels, 2H, 2W)
    N, IN_CH, S_FACTOR, H, W = 2, 16, 16, 16, 16
    CIN, COUT = IN_CH + S_FACTOR, IN_CH

    key = jax.random.PRNGKey(0)
    kx, ky, kw = jax.random.split(key, 3)
    x = jax.random.normal(kx, (N, CIN, H, W), dtype=jnp.float32)
    y = jax.random.normal(ky, (N, COUT, 2 * H, 2 * W), dtype=jnp.float32)
    w_conv = 0.1 * jax.random.normal(kw, (COUT, CIN, 1, 1), dtype=jnp.float32)

    ref = skip_upsample_reference(x, y, w_conv)

    # f32 path, H split into two 8-row tiles: exercises the cross-tile 1-row
    # halo and the clamped halo at the top/bottom image edges.
    out = skip_upsample_forward(x, y, w_conv, tile_h=8)
    jax.block_until_ready(out)
    assert out.shape == (N, COUT, 2 * H, 2 * W)
    max_err = float(jnp.max(jnp.abs(out - ref)))
    assert jnp.allclose(out, ref, atol=1e-4, rtol=1e-4), max_err

    # Native-dtype (bf16) I/O path: math stays f32 inside the kernel, storage
    # is bf16 (halves HBM traffic at production sizes).
    out_bf16 = skip_upsample_forward(x.astype(jnp.bfloat16),
                                     y.astype(jnp.bfloat16),
                                     w_conv, tile_h=8)
    jax.block_until_ready(out_bf16)
    assert out_bf16.dtype == jnp.bfloat16
    bf16_err = float(jnp.max(jnp.abs(out_bf16.astype(jnp.float32) - ref)))
    assert bf16_err < 0.25, bf16_err

    print("KERNEL_OK")
</pallas_src>

<mosaic_0001>
module attributes {stable_mosaic.version = 11 : i64} {
  func.func @_skip_upsample_kernel(%arg0: i32, %arg1: i32, %arg2: memref<1x32x16x16xf32, #tpu.memory_space<vmem>>, %arg3: memref<1x16x8x64xf32, #tpu.memory_space<vmem>>, %arg4: memref<16x32xf32, #tpu.memory_space<vmem>>, %arg5: memref<128x256xf32, #tpu.memory_space<vmem>>, %arg6: memref<16x32xf32, #tpu.memory_space<vmem>>, %arg7: memref<1x16x8x64xf32, #tpu.memory_space<vmem>>) attributes {dimension_semantics = [#tpu.dimension_semantics<parallel>, #tpu.dimension_semantics<parallel>], iteration_bounds = array<i64: 2, 2>, scalar_prefetch = 0 : i64, scratch_operands = 0 : i64, tpu.core_type = #tpu.core_type<tc>, window_params = [{transform_indices = @transform_0, window_bounds = array<i64: 1, 32, 16, 16>}, {transform_indices = @transform_1, window_bounds = array<i64: 1, 16, 8, 64>}, {pipeline_mode = #tpu.pipeline_mode<synchronous>, transform_indices = @transform_2, window_bounds = array<i64: 16, 32>}, {pipeline_mode = #tpu.pipeline_mode<synchronous>, transform_indices = @transform_3, window_bounds = array<i64: 128, 256>}, {pipeline_mode = #tpu.pipeline_mode<synchronous>, transform_indices = @transform_4, window_bounds = array<i64: 16, 32>}, {transform_indices = @transform_5, window_bounds = array<i64: 1, 16, 8, 64>}]} {
    %c8_i32 = arith.constant 8 : i32
    %0 = arith.muli %arg1, %c8_i32 : i32
    %1 = tpu.assume_multiple %0, 8 : i32
    %c1_i32 = arith.constant 1 : i32
    %2 = arith.subi %1, %c1_i32 : i32
    %c0_i32 = arith.constant 0 : i32
    %3 = arith.maxsi %2, %c0_i32 : i32
    %c8_i32_0 = arith.constant 8 : i32
    %4 = arith.addi %1, %c8_i32_0 : i32
    %c15_i32 = arith.constant 15 : i32
    %5 = arith.minsi %4, %c15_i32 : i32
    %c0 = arith.constant 0 : index
    %c0_1 = arith.constant 0 : index
    %6 = vector.load %arg4[%c0, %c0_1] : memref<16x32xf32, #tpu.memory_space<vmem>>, vector<16x32xf32>
    %c0_2 = arith.constant 0 : index
    %c0_3 = arith.constant 0 : index
    %7 = vector.load %arg5[%c0_2, %c0_3] : memref<128x256xf32, #tpu.memory_space<vmem>>, vector<128x256xf32>
    %c0_4 = arith.constant 0 : index
    %c0_5 = arith.constant 0 : index
    %8 = arith.index_cast %3 : i32 to index
    %c0_6 = arith.constant 0 : index
    %9 = vector.load %arg2[%c0_4, %c0_5, %8, %c0_6] : memref<1x32x16x16xf32, #tpu.memory_space<vmem>>, vector<1x32x1x16xf32>
    %10 = vector.shape_cast %9 : vector<1x32x1x16xf32> to vector<32x1x16xf32>
    %11 = vector.shape_cast %10 : vector<32x1x16xf32> to vector<32x16xf32>
    %cst = arith.constant dense<0.000000e+00> : vector<16x16xf32>
    %12 = tpu.matmul %6, %11, %cst {dimension_numbers = #tpu.dot_dimension_numbers<[1], [0], [0], [1], [0, 0, 1, 1], [], []>} : vector<16x32xf32>, vector<32x16xf32>, vector<16x16xf32> -> vector<16x16xf32>
    %13 = vector.shape_cast %12 : vector<16x16xf32> to vector<16x1x16xf32>
    %c0_i32_7 = arith.constant 0 : i32
    %14 = arith.addi %1, %c0_i32_7 : i32
    %c0_8 = arith.constant 0 : index
    %c0_9 = arith.constant 0 : index
    %15 = arith.index_cast %14 : i32 to index
    %c0_10 = arith.constant 0 : index
    %16 = vector.load %arg2[%c0_8, %c0_9, %15, %c0_10] : memref<1x32x16x16xf32, #tpu.memory_space<vmem>>, vector<1x32x8x16xf32>
    %17 = vector.shape_cast %16 : vector<1x32x8x16xf32> to vector<32x8x16xf32>
    %18 = vector.shape_cast %17 : vector<32x8x16xf32> to vector<256x16xf32>
    %cst_11 = arith.constant dense<0.000000e+00> : vector<128x16xf32>
    %19 = tpu.matmul %7, %18, %cst_11 {dimension_numbers = #tpu.dot_dimension_numbers<[1], [0], [0], [1], [0, 0, 1, 1], [], []>} : vector<128x256xf32>, vector<256x16xf32>, vector<128x16xf32> -> vector<128x16xf32>
    %20 = vector.shape_cast %19 : vector<128x16xf32> to vector<16x8x16xf32>
    %c0_12 = arith.constant 0 : index
    %c0_13 = arith.constant 0 : index
    %21 = arith.index_cast %5 : i32 to index
    %c0_14 = arith.constant 0 : index
    %22 = vector.load %arg2[%c0_12, %c0_13, %21, %c0_14] : memref<1x32x16x16xf32, #tpu.memory_space<vmem>>, vector<1x32x1x16xf32>
    %23 = vector.shape_cast %22 : vector<1x32x1x16xf32> to vector<32x1x16xf32>
    %24 = vector.shape_cast %23 : vector<32x1x16xf32> to vector<32x16xf32>
    %cst_15 = arith.constant dense<0.000000e+00> : vector<16x16xf32>
    %25 = tpu.matmul %6, %24, %cst_15 {dimension_numbers = #tpu.dot_dimension_numbers<[1], [0], [0], [1], [0, 0, 1, 1], [], []>} : vector<16x32xf32>, vector<32x16xf32>, vector<16x16xf32> -> vector<16x16xf32>
    %26 = vector.shape_cast %25 : vector<16x16xf32> to vector<16x1x16xf32>
    %27 = tpu.concatenate %13, %20, %26 in 1 : vector<16x1x16xf32>, vector<16x8x16xf32>, vector<16x1x16xf32> -> vector<16x10x16xf32>
    %28 = vector.extract_strided_slice %27 {offsets = [0, 0, 0], sizes = [16, 8, 16], strides = [1, 1, 1]} : vector<16x10x16xf32> to vector<16x8x16xf32>
    %cst_16 = arith.constant 2.500000e-01 : f32
    %29 = vector.broadcast %cst_16 : f32 to vector<16x8x16xf32>
    %30 = arith.mulf %29, %28 : vector<16x8x16xf32>
    %31 = vector.extract_strided_slice %27 {offsets = [0, 1, 0], sizes = [16, 8, 16], strides = [1, 1, 1]} : vector<16x10x16xf32> to vector<16x8x16xf32>
    %cst_17 = arith.constant 7.500000e-01 : f32
    %32 = vector.broadcast %cst_17 : f32 to vector<16x8x16xf32>
    %33 = arith.mulf %32, %31 : vector<16x8x16xf32>
    %34 = arith.addf %30, %33 : vector<16x8x16xf32>
    %35 = vector.extract_strided_slice %27 {offsets = [0, 1, 0], sizes = [16, 8, 16], strides = [1, 1, 1]} : vector<16x10x16xf32> to vector<16x8x16xf32>
    %cst_18 = arith.constant 7.500000e-01 : f32
    %36 = vector.broadcast %cst_18 : f32 to vector<16x8x16xf32>
    %37 = arith.mulf %36, %35 : vector<16x8x16xf32>
    %38 = vector.extract_strided_slice %27 {offsets = [0, 2, 0], sizes = [16, 8, 16], strides = [1, 1, 1]} : vector<16x10x16xf32> to vector<16x8x16xf32>
    %cst_19 = arith.constant 2.500000e-01 : f32
    %39 = vector.broadcast %cst_19 : f32 to vector<16x8x16xf32>
    %40 = arith.mulf %39, %38 : vector<16x8x16xf32>
    %41 = arith.addf %37, %40 : vector<16x8x16xf32>
    %42 = vector.shape_cast %34 : vector<16x8x16xf32> to vector<128x16xf32>
    %43 = vector.shape_cast %41 : vector<16x8x16xf32> to vector<128x16xf32>
    %44 = tpu.concatenate %42, %43 in 0 : vector<128x16xf32>, vector<128x16xf32> -> vector<256x16xf32>
    %c0_20 = arith.constant 0 : index
    %c0_21 = arith.constant 0 : index
    %45 = vector.load %arg6[%c0_20, %c0_21] : memref<16x32xf32, #tpu.memory_space<vmem>>, vector<16x32xf32>
    %cst_22 = arith.constant dense<0.000000e+00> : vector<256x32xf32>
    %46 = tpu.matmul %44, %45, %cst_22 {dimension_numbers = #tpu.dot_dimension_numbers<[1], [0], [0], [1], [0, 0, 1, 1], [], []>} : vector<256x16xf32>, vector<16x32xf32>, vector<256x32xf32> -> vector<256x32xf32>
    %47 = vector.extract_strided_slice %46 {offsets = [0, 0], sizes = [128, 32], strides = [1, 1]} : vector<256x32xf32> to vector<128x32xf32>
    %48 = vector.shape_cast %47 : vector<128x32xf32> to vector<16x8x32xf32>
    %49 = vector.extract_strided_slice %46 {offsets = [128, 0], sizes = [128, 32], strides = [1, 1]} : vector<256x32xf32> to vector<128x32xf32>
    %50 = vector.shape_cast %49 : vector<128x32xf32> to vector<16x8x32xf32>
    %c0_23 = arith.constant 0 : index
    %c0_24 = arith.constant 0 : index
    %c0_25 = arith.constant 0 : index
    %c0_26 = arith.constant 0 : index
    %51 = vector.load %arg3[%c0_23, %c0_24, %c0_25, %c0_26] : memref<1x16x8x64xf32, #tpu.memory_space<vmem>>, vector<1x16x8x32xf32>
    %52 = vector.shape_cast %51 : vector<1x16x8x32xf32> to vector<16x8x32xf32>
    %53 = arith.addf %48, %52 : vector<16x8x32xf32>
    %c0_27 = arith.constant 0 : index
    %c0_28 = arith.constant 0 : index
    %c0_29 = arith.constant 0 : index
    %c0_30 = arith.constant 0 : index
    %54 = vector.load %arg7[%c0_27, %c0_28, %c0_29, %c0_30] : memref<1x16x8x64xf32, #tpu.memory_space<vmem>>, vector<1x16x8x32xf32>
    %55 = vector.shape_cast %54 : vector<1x16x8x32xf32> to vector<16x8x32xf32>
    %56 = vector.shape_cast %53 : vector<16x8x32xf32> to vector<1x16x8x32xf32>
    tpu.vector_store %arg7[%c0_27, %c0_28, %c0_29, %c0_30], %56 {strides = array<i32>} : memref<1x16x8x64xf32, #tpu.memory_space<vmem>>, vector<1x16x8x32xf32>,
    %c0_31 = arith.constant 0 : index
    %c0_32 = arith.constant 0 : index
    %c0_33 = arith.constant 0 : index
    %c32 = arith.constant 32 : index
    %57 = vector.load %arg3[%c0_31, %c0_32, %c0_33, %c32] : memref<1x16x8x64xf32, #tpu.memory_space<vmem>>, vector<1x16x8x32xf32>
    %58 = vector.shape_cast %57 : vector<1x16x8x32xf32> to vector<16x8x32xf32>
    %59 = arith.addf %50, %58 : vector<16x8x32xf32>
    %c0_34 = arith.constant 0 : index
    %c0_35 = arith.constant 0 : index
    %c0_36 = arith.constant 0 : index
    %c32_37 = arith.constant 32 : index
    %60 = vector.load %arg7[%c0_34, %c0_35, %c0_36, %c32_37] : memref<1x16x8x64xf32, #tpu.memory_space<vmem>>, vector<1x16x8x32xf32>
    %61 = vector.shape_cast %60 : vector<1x16x8x32xf32> to vector<16x8x32xf32>
    %62 = vector.shape_cast %59 : vector<16x8x32xf32> to vector<1x16x8x32xf32>
    tpu.vector_store %arg7[%c0_34, %c0_35, %c0_36, %c32_37], %62 {strides = array<i32>} : memref<1x16x8x64xf32, #tpu.memory_space<vmem>>, vector<1x16x8x32xf32>,
    return
  }
  func.func @transform_0(%arg0: i32, %arg1: i32) -> (i32, i32, i32, i32) {
    %c0_i32 = arith.constant 0 : i32
    %c0_i32_0 = arith.constant 0 : i32
    %c0_i32_1 = arith.constant 0 : i32
    %c0_i32_2 = arith.constant 0 : i32
    return %arg0, %c0_i32, %c0_i32_0, %c0_i32_1 : i32, i32, i32, i32
  }
  func.func @transform_1(%arg0: i32, %arg1: i32) -> (i32, i32, i32, i32) {
    %c0_i32 = arith.constant 0 : i32
    %c0_i32_0 = arith.constant 0 : i32
    %c0_i32_1 = arith.constant 0 : i32
    return %arg0, %c0_i32, %arg1, %c0_i32_0 : i32, i32, i32, i32
  }
  func.func @transform_2(%arg0: i32, %arg1: i32) -> (i32, i32) {
    %c0_i32 = arith.constant 0 : i32
    %c0_i32_0 = arith.constant 0 : i32
    %c0_i32_1 = arith.constant 0 : i32
    return %c0_i32, %c0_i32_0 : i32, i32
  }
  func.func @transform_3(%arg0: i32, %arg1: i32) -> (i32, i32) {
    %c0_i32 = arith.constant 0 : i32
    %c0_i32_0 = arith.constant 0 : i32
    %c0_i32_1 = arith.constant 0 : i32
    return %c0_i32, %c0_i32_0 : i32, i32
  }
  func.func @transform_4(%arg0: i32, %arg1: i32) -> (i32, i32) {
    %c0_i32 = arith.constant 0 : i32
    %c0_i32_0 = arith.constant 0 : i32
    %c0_i32_1 = arith.constant 0 : i32
    return %c0_i32, %c0_i32_0 : i32, i32
  }
  func.func @transform_5(%arg0: i32, %arg1: i32) -> (i32, i32, i32, i32) {
    %c0_i32 = arith.constant 0 : i32
    %c0_i32_0 = arith.constant 0 : i32
    %c0_i32_1 = arith.constant 0 : i32
    return %arg0, %c0_i32, %arg1, %c0_i32_0 : i32, i32, i32, i32
  }
}

</mosaic_0001>

<llo_original>
// kernel: skip_upsample_forward.1
$region0: #{skip_upsample_forward.1}
  #allocation0 [shape = 'u32[]', space=smem, size = 0x4, offset = 0x4, fixed_abs, tag = 'smem constant byte address 0x4 - core index']
  #allocation1 [shape = 'u32[144,128]{1,0:T(1,128)}', space=vmem, size = 0x12000, scoped, tag = 'internal scratch']
  %s0 = inlined_call_operand.vmem [shape: f32[2,32,16,16], index: 0, kind: input, shape index: {}]
  %s1 = inlined_call_operand.vmem [shape: f32[2,16,16,64], index: 1, kind: input, shape index: {}]
  %s2 = inlined_call_operand.vmem [shape: f32[16,32], index: 2, kind: input, shape index: {}]
  %s3 = inlined_call_operand.vmem [shape: f32[128,256], index: 3, kind: input, shape index: {}]
  %s4 = inlined_call_operand.vmem [shape: f32[16,32], index: 4, kind: input, shape index: {}]
  %s5 = inlined_call_operand.vmem [shape: f32[2,16,16,64], index: 5, kind: output, shape index: {}]
  %s6 = sld [smem:[#allocation0]]
  $region125: #{skip_upsample_forward.1} parent=0
    _
  %s8 = ssub.s32 1, %s6
  %s9 = scalar_select 0, %s8, %s6
  $region1: #{skip_upsample_forward.1} parent=0
    #allocation2 [shape = 'u8[131072]{0}', space=vmem, size = 0x20000, scoped, tag = 'input window, operand 1']
    #allocation3 [shape = 'u8[131072]{0}', space=vmem, size = 0x20000, scoped, tag = 'output window, operand 0']
    loop: start=0, step=1, limit=6
    $region2: #{skip_upsample_forward.1} parent=1 // loop_pre_header
      _
    $region3: #{skip_upsample_forward.1} parent=1 // loop_header
      %s11 = sphi 0, %s15
      %p12 = scmp.ge.s32.totalorder %s11, 6
      %s18 = sphi 0, %s30
      %s19 = sphi 0, %s26
      %s20 = sphi 0, %s18
      %s21 = sphi 0, %s19
      %s22 = sphi 0, %s20
      %s23 = sphi 0, %s21
      %s33 = sphi 0, %s35
      %s36 = sphi 0, %s33
      %s37 = sphi 0, %s36
      %s53 = sphi 0, %s37
      %s61 = sphi 0, %s63
      %s64 = sphi 0, %s61
      %s65 = sphi 0, %s64
      %s81 = sphi 0, %s65
      %s85 = sphi 0, %s85
      %s87 = sphi 0, %s85
      %s88 = sphi 0, %s87
      %s102 = sphi 0, %s88
      %s106 = sphi 0, %s106
      %s108 = sphi 0, %s106
      %s109 = sphi 0, %s108
      %s123 = sphi 0, %s109
      %s127 = sphi 0, %s127
      %s129 = sphi 0, %s127
      %s130 = sphi 0, %s129
      %s144 = sphi 0, %s130
      %s152 = sphi 0, %s154
      %s155 = sphi 0, %s152
      %s156 = sphi 0, %s155
      %s172 = sphi 0, %s156
    $region4: #{skip_upsample_forward.1} parent=1 // loop_header_branch
      %14 = sbr.rel (%p12) target = $region8
    $region5: #{skip_upsample_forward.1} parent=1 // loop_body
      %s16 = ssub.s32 %s11, 1
      %s17 = ssub.s32 %s11, 2
      %s24 = sadd.s32 1, %s19
      %p25 = scmp.ge.s32.totalorder %s24, 2
      %s26 = scalar_select %p25, 0, %s24
      %s27 = sadd.s32 1, %s18
      %s28 = scalar_select %p25, %s27, %s18
      %p29 = scmp.ge.s32.totalorder %s28, 2
      %s30 = scalar_select %p29, 0, %s28
      %s31 = ssub.s32 %s18, %s30
      %p32 = scmp.eq.s32.totalorder %s31, 0
      %s34 = sadd.s32 %s33, 1
      %s35 = scalar_select %p32, %s33, %s34
      %p38 = pneg %p32
      %p39 = scmp.eq.s32.totalorder %s11, 3
      %p40 = por %p38, %p39
      %p41 = scmp.ne.s32.totalorder %s33, %s36
      %p42 = scmp.eq.s32.totalorder %s11, 0
      %p43 = por %p41, %p42
      %p44 = scmp.ne.s32.totalorder %s33, %s36
      %p45 = scmp.eq.s32.totalorder %s16, 3
      %p46 = por %p44, %p45
      %p47 = scmp.ne.s32.totalorder %s36, %s37
      %p48 = scmp.eq.s32.totalorder %s16, 0
      %p49 = por %p47, %p48
      %p50 = scmp.ne.s32.totalorder %s36, %s37
      %p51 = scmp.eq.s32.totalorder %s17, 3
      %p52 = por %p50, %p51
      %p54 = scmp.ne.s32.totalorder %s37, %s53
      %p55 = scmp.eq.s32.totalorder %s17, 0
      %p56 = por %p54, %p55
      %s57 = ssub.s32 %s18, %s30
      %s58 = ssub.s32 %s19, %s26
      %s59 = sor.u32 %s57, %s58
      %p60 = scmp.eq.s32.totalorder %s59, 0
      %s62 = sadd.s32 %s61, 1
      %s63 = scalar_select %p60, %s61, %s62
      %p66 = pneg %p60
      %p67 = scmp.eq.s32.totalorder %s11, 3
      %p68 = por %p66, %p67
      %p69 = scmp.ne.s32.totalorder %s61, %s64
      %p70 = scmp.eq.s32.totalorder %s11, 0
      %p71 = por %p69, %p70
      %p72 = scmp.ne.s32.totalorder %s61, %s64
      %p73 = scmp.eq.s32.totalorder %s16, 3
      %p74 = por %p72, %p73
      %p75 = scmp.ne.s32.totalorder %s64, %s65
      %p76 = scmp.eq.s32.totalorder %s16, 0
      %p77 = por %p75, %p76
      %p78 = scmp.ne.s32.totalorder %s64, %s65
      %p79 = scmp.eq.s32.totalorder %s17, 3
      %p80 = por %p78, %p79
      %p82 = scmp.ne.s32.totalorder %s65, %s81
      %p83 = scmp.eq.s32.totalorder %s17, 0
      %p84 = por %p82, %p83
      %s86 = sadd.s32 %s85, 1
      %p89 = scmp.eq.s32.totalorder %s11, 3
      %p90 = scmp.ne.s32.totalorder %s85, %s87
      %p91 = scmp.eq.s32.totalorder %s11, 0
      %p92 = por %p90, %p91
      %p93 = scmp.ne.s32.totalorder %s85, %s87
      %p94 = scmp.eq.s32.totalorder %s16, 3
      %p95 = por %p93, %p94
      %p96 = scmp.ne.s32.totalorder %s87, %s88
      %p97 = scmp.eq.s32.totalorder %s16, 0
      %p98 = por %p96, %p97
      %p99 = scmp.ne.s32.totalorder %s87, %s88
      %p100 = scmp.eq.s32.totalorder %s17, 3
      %p101 = por %p99, %p100
      %p103 = scmp.ne.s32.totalorder %s88, %s102
      %p104 = scmp.eq.s32.totalorder %s17, 0
      %p105 = por %p103, %p104
      %s107 = sadd.s32 %s106, 1
      %p110 = scmp.eq.s32.totalorder %s11, 3
      %p111 = scmp.ne.s32.totalorder %s106, %s108
      %p112 = scmp.eq.s32.totalorder %s11, 0
      %p113 = por %p111, %p112
      %p114 = scmp.ne.s32.totalorder %s106, %s108
      %p115 = scmp.eq.s32.totalorder %s16, 3
      %p116 = por %p114, %p115
      %p117 = scmp.ne.s32.totalorder %s108, %s109
      %p118 = scmp.eq.s32.totalorder %s16, 0
      %p119 = por %p117, %p118
      %p120 = scmp.ne.s32.totalorder %s108, %s109
      %p121 = scmp.eq.s32.totalorder %s17, 3
      %p122 = por %p120, %p121
      %p124 = scmp.ne.s32.totalorder %s109, %s123
      %p125 = scmp.eq.s32.totalorder %s17, 0
      %p126 = por %p124, %p125
      %s128 = sadd.s32 %s127, 1
      %p131 = scmp.eq.s32.totalorder %s11, 3
      %p132 = scmp.ne.s32.totalorder %s127, %s129
      %p133 = scmp.eq.s32.totalorder %s11, 0
      %p134 = por %p132, %p133
      %p135 = scmp.ne.s32.totalorder %s127, %s129
      %p136 = scmp.eq.s32.totalorder %s16, 3
      %p137 = por %p135, %p136
      %p138 = scmp.ne.s32.totalorder %s129, %s130
      %p139 = scmp.eq.s32.totalorder %s16, 0
      %p140 = por %p138, %p139
      %p141 = scmp.ne.s32.totalorder %s129, %s130
      %p142 = scmp.eq.s32.totalorder %s17, 3
      %p143 = por %p141, %p142
      %p145 = scmp.ne.s32.totalorder %s130, %s144
      %p146 = scmp.eq.s32.totalorder %s17, 0
      %p147 = por %p145, %p146
      %s148 = ssub.s32 %s18, %s30
      %s149 = ssub.s32 %s19, %s26
      %s150 = sor.u32 %s148, %s149
      %p151 = scmp.eq.s32.totalorder %s150, 0
      %s153 = sadd.s32 %s152, 1
      %s154 = scalar_select %p151, %s152, %s153
      %p157 = pneg %p151
      %p158 = scmp.eq.s32.totalorder %s11, 3
      %p159 = por %p157, %p158
      %p160 = scmp.ne.s32.totalorder %s152, %s155
      %p161 = scmp.eq.s32.totalorder %s11, 0
      %p162 = por %p160, %p161
      %p163 = scmp.ne.s32.totalorder %s152, %s155
      %p164 = scmp.eq.s32.totalorder %s16, 3
      %p165 = por %p163, %p164
      %p166 = scmp.ne.s32.totalorder %s155, %s156
      %p167 = scmp.eq.s32.totalorder %s16, 0
      %p168 = por %p166, %p167
      %p169 = scmp.ne.s32.totalorder %s155, %s156
      %p170 = scmp.eq.s32.totalorder %s17, 3
      %p171 = por %p169, %p170
      %p173 = scmp.ne.s32.totalorder %s156, %s172
      %p174 = scmp.eq.s32.totalorder %s17, 0
      %p175 = por %p173, %p174
      %p176 = scmp.le.s32.totalorder 1, %s11
      %p177 = scmp.lt.s32.totalorder %s11, 5
      %p178 = pnand %p176, %p177
      %p179 = pneg %p178
      // Predicated region
      $region9: #{skip_upsample_forward.1} parent=5 // pred_check
        _
      $region10: #{skip_upsample_forward.1} parent=5 // pred_check_branch
        %181 = sbr.rel (%p178) target = $region12
      $region11: #{skip_upsample_forward.1} parent=5 // pred_region
        %s182 = ssub.s32 %s11, 1
        // Predicated region
        $region13: #{skip_upsample_forward.1} parent=11 // pred_check
          %p183 = pneg %p98
        $region14: #{skip_upsample_forward.1} parent=11 // pred_check_branch
          %185 = sbr.rel (%p183) target = $region16
        $region15: #{skip_upsample_forward.1} parent=11 // pred_region
          _
        $region16: #{skip_upsample_forward.1} parent=11 // pred_fallthru
          _
        // Predicated region
        $region17: #{skip_upsample_forward.1} parent=11 // pred_check
          %p186 = pneg %p119
        $region18: #{skip_upsample_forward.1} parent=11 // pred_check_branch
          %188 = sbr.rel (%p186) target = $region20
        $region19: #{skip_upsample_forward.1} parent=11 // pred_region
          _
        $region20: #{skip_upsample_forward.1} parent=11 // pred_fallthru
          _
        // Predicated region
        $region21: #{skip_upsample_forward.1} parent=11 // pred_check
          %p189 = pneg %p140
        $region22: #{skip_upsample_forward.1} parent=11 // pred_check_branch
          %191 = sbr.rel (%p189) target = $region24
        $region23: #{skip_upsample_forward.1} parent=11 // pred_region
          _
        $region24: #{skip_upsample_forward.1} parent=11 // pred_fallthru
          _
      $region12: #{skip_upsample_forward.1} parent=5 // pred_fallthru
        _
      %p192 = scmp.lt.s32.totalorder %s11, 4
      // Predicated region
      $region25: #{skip_upsample_forward.1} parent=5 // pred_check
        %p193 = pneg %p192
      $region26: #{skip_upsample_forward.1} parent=5 // pred_check_branch
        %195 = sbr.rel (%p193) target = $region28
      $region27: #{skip_upsample_forward.1} parent=5 // pred_region
        // Predicated region
        $region29: #{skip_upsample_forward.1} parent=27 // pred_check
          %p196 = pneg %p43
        $region30: #{skip_upsample_forward.1} parent=27 // pred_check_branch
          %198 = sbr.rel (%p196) target = $region32
        $region31: #{skip_upsample_forward.1} parent=27 // pred_region
          %p199 = scmp.lt.s32.totalorder %s18, 1
          %s200 = scalar_select %p199, %s18, 1
          %s201 = smul.addr %s200, 64
          %s202 = smul.addr %s201, 8
          %s203 = scalar_lea.vmem %s0, %s202
        $region32: #{skip_upsample_forward.1} parent=27 // pred_fallthru
          _
        // Predicated region
        $region33: #{skip_upsample_forward.1} parent=27 // pred_check
          %p204 = pneg %p71
        $region34: #{skip_upsample_forward.1} parent=27 // pred_check_branch
          %206 = sbr.rel (%p204) target = $region36
        $region35: #{skip_upsample_forward.1} parent=27 // pred_region
          %s207 = sand.u32 %s61, 1
          %s208 = sand.u32 %s61, 1
          %s209 = smul.addr %s208, 128
          %s210 = scalar_lea.vmem [#allocation2], %s209
          %s211 = smul.addr %s18, 32
          %s212 = sadd.s32 %s19, %s211
          %s213 = smul.addr %s212, 8
          %s214 = scalar_lea.vmem %s1, %s213
          // Predicated region
          $region37: #{skip_upsample_forward.1} parent=35 // pred_check
            _
          $region38: #{skip_upsample_forward.1} parent=35 // pred_check_branch
            %216 = sbr.rel (0) target = $region40
          $region39: #{skip_upsample_forward.1} parent=35 // pred_region
            // Predicated region
            $region41: #{skip_upsample_forward.1} parent=39 // pred_check
              _
            $region42: #{skip_upsample_forward.1} parent=39 // pred_check_branch
              %218 = sbr.rel (0) target = $region44
            $region43: #{skip_upsample_forward.1} parent=39 // pred_region
              // Predicated region
              $region56: #{skip_upsample_forward.1} parent=43 // pred_check
                _
              $region57: #{skip_upsample_forward.1} parent=43 // pred_check_branch
                %263 = sbr.rel (0) target = $region59
              $region58: #{skip_upsample_forward.1} parent=43 // pred_region
                loop: start=0, step=1, limit=1
                $region60: #{skip_upsample_forward.1} parent=58 // loop_pre_header
                  _
                $region61: #{skip_upsample_forward.1} parent=58 // loop_header
                  %s265 = sphi 0, %s269
                  %p266 = scmp.ge.s32.totalorder %s265, 1
                  %s270 = sphi %s214, %s214
                  %s271 = sphi %s210, %s210
                $region62: #{skip_upsample_forward.1} parent=58 // loop_header_branch
                  %268 = sbr.rel (%p266) target = $region66
                $region63: #{skip_upsample_forward.1} parent=58 // loop_body
                  %v272 = vld [vmem:[%s270] sm:$0xff]
                  %273 = vst [vmem:[%s271] sm:$0xff] %v272
                  %v274 = vld [vmem:[%s270 + $0x10] sm:$0xff]
                  %275 = vst [vmem:[%s271 + $0x8] sm:$0xff] %v274
                  %v276 = vld [vmem:[%s270 + $0x20] sm:$0xff]
                  %277 = vst [vmem:[%s271 + $0x10] sm:$0xff] %v276
                  %v278 = vld [vmem:[%s270 + $0x30] sm:$0xff]
                  %279 = vst [vmem:[%s271 + $0x18] sm:$0xff] %v278
                  %v280 = vld [vmem:[%s270 + $0x40] sm:$0xff]
                  %281 = vst [vmem:[%s271 + $0x20] sm:$0xff] %v280
                  %v282 = vld [vmem:[%s270 + $0x50] sm:$0xff]
                  %283 = vst [vmem:[%s271 + $0x28] sm:$0xff] %v282
                  %v284 = vld [vmem:[%s270 + $0x60] sm:$0xff]
                  %285 = vst [vmem:[%s271 + $0x30] sm:$0xff] %v284
                  %v286 = vld [vmem:[%s270 + $0x70] sm:$0xff]
                  %287 = vst [vmem:[%s271 + $0x38] sm:$0xff] %v286
                  %v288 = vld [vmem:[%s270 + $0x80] sm:$0xff]
                  %289 = vst [vmem:[%s271 + $0x40] sm:$0xff] %v288
                  %v290 = vld [vmem:[%s270 + $0x90] sm:$0xff]
                  %291 = vst [vmem:[%s271 + $0x48] sm:$0xff] %v290
                  %v292 = vld [vmem:[%s270 + $0xa0] sm:$0xff]
                  %293 = vst [vmem:[%s271 + $0x50] sm:$0xff] %v292
                  %v294 = vld [vmem:[%s270 + $0xb0] sm:$0xff]
                  %295 = vst [vmem:[%s271 + $0x58] sm:$0xff] %v294
                  %v296 = vld [vmem:[%s270 + $0xc0] sm:$0xff]
                  %297 = vst [vmem:[%s271 + $0x60] sm:$0xff] %v296
                  %v298 = vld [vmem:[%s270 + $0xd0] sm:$0xff]
                  %299 = vst [vmem:[%s271 + $0x68] sm:$0xff] %v298
                  %v300 = vld [vmem:[%s270 + $0xe0] sm:$0xff]
                  %301 = vst [vmem:[%s271 + $0x70] sm:$0xff] %v300
                  %v302 = vld [vmem:[%s270 + $0xf0] sm:$0xff]
                  %303 = vst [vmem:[%s271 + $0x78] sm:$0xff] %v302
                $region64: #{skip_upsample_forward.1} parent=58 // loop_footer
                  %s269 = sadd.s32 1, %s265
                $region65: #{skip_upsample_forward.1} parent=58 // loop_footer_branch
                  %264 = sbr.rel target = $region61
                $region66: #{skip_upsample_forward.1} parent=58 // loop_exit
                  _
              $region59: #{skip_upsample_forward.1} parent=43 // pred_fallthru
                _
              // Predicated region
              $region67: #{skip_upsample_forward.1} parent=43 // pred_check
                _
              $region68: #{skip_upsample_forward.1} parent=43 // pred_check_branch
                %305 = sbr.rel target = $region70
              $region69: #{skip_upsample_forward.1} parent=43 // pred_region
                _
              $region70: #{skip_upsample_forward.1} parent=43 // pred_fallthru
                _
            $region44: #{skip_upsample_forward.1} parent=39 // pred_fallthru
              _
            // Predicated region
            $region45: #{skip_upsample_forward.1} parent=39 // pred_check
              _
            $region46: #{skip_upsample_forward.1} parent=39 // pred_check_branch
              %220 = sbr.rel target = $region48
            $region47: #{skip_upsample_forward.1} parent=39 // pred_region
              loop: start=0, step=1, limit=1
              $region49: #{skip_upsample_forward.1} parent=47 // loop_pre_header
                _
              $region50: #{skip_upsample_forward.1} parent=47 // loop_header
                %s223 = sphi 0, %s227
                %p224 = scmp.ge.s32.totalorder %s223, 1
                %s228 = sphi %s214, %s214
                %s229 = sphi %s210, %s210
              $region51: #{skip_upsample_forward.1} parent=47 // loop_header_branch
                %226 = sbr.rel (%p224) target = $region55
              $region52: #{skip_upsample_forward.1} parent=47 // loop_body
                %v230 = vld [vmem:[%s228] sm:$0xff]
                %231 = vst [vmem:[%s229] sm:$0xff] %v230
                %v232 = vld [vmem:[%s228 + $0x10] sm:$0xff]
                %233 = vst [vmem:[%s229 + $0x8] sm:$0xff] %v232
                %v234 = vld [vmem:[%s228 + $0x20] sm:$0xff]
                %235 = vst [vmem:[%s229 + $0x10] sm:$0xff] %v234
                %v236 = vld [vmem:[%s228 + $0x30] sm:$0xff]
                %237 = vst [vmem:[%s229 + $0x18] sm:$0xff] %v236
                %v238 = vld [vmem:[%s228 + $0x40] sm:$0xff]
                %239 = vst [vmem:[%s229 + $0x20] sm:$0xff] %v238
                %v240 = vld [vmem:[%s228 + $0x50] sm:$0xff]
                %241 = vst [vmem:[%s229 + $0x28] sm:$0xff] %v240
                %v242 = vld [vmem:[%s228 + $0x60] sm:$0xff]
                %243 = vst [vmem:[%s229 + $0x30] sm:$0xff] %v242
                %v244 = vld [vmem:[%s228 + $0x70] sm:$0xff]
                %245 = vst [vmem:[%s229 + $0x38] sm:$0xff] %v244
                %v246 = vld [vmem:[%s228 + $0x80] sm:$0xff]
                %247 = vst [vmem:[%s229 + $0x40] sm:$0xff] %v246
                %v248 = vld [vmem:[%s228 + $0x90] sm:$0xff]
                %249 = vst [vmem:[%s229 + $0x48] sm:$0xff] %v248
                %v250 = vld [vmem:[%s228 + $0xa0] sm:$0xff]
                %251 = vst [vmem:[%s229 + $0x50] sm:$0xff] %v250
                %v252 = vld [vmem:[%s228 + $0xb0] sm:$0xff]
                %253 = vst [vmem:[%s229 + $0x58] sm:$0xff] %v252
                %v254 = vld [vmem:[%s228 + $0xc0] sm:$0xff]
                %255 = vst [vmem:[%s229 + $0x60] sm:$0xff] %v254
                %v256 = vld [vmem:[%s228 + $0xd0] sm:$0xff]
                %257 = vst [vmem:[%s229 + $0x68] sm:$0xff] %v256
                %v258 = vld [vmem:[%s228 + $0xe0] sm:$0xff]
                %259 = vst [vmem:[%s229 + $0x70] sm:$0xff] %v258
                %v260 = vld [vmem:[%s228 + $0xf0] sm:$0xff]
                %261 = vst [vmem:[%s229 + $0x78] sm:$0xff] %v260
              $region53: #{skip_upsample_forward.1} parent=47 // loop_footer
                %s227 = sadd.s32 1, %s223
              $region54: #{skip_upsample_forward.1} parent=47 // loop_footer_branch
                %222 = sbr.rel target = $region50
              $region55: #{skip_upsample_forward.1} parent=47 // loop_exit
                _
            $region48: #{skip_upsample_forward.1} parent=39 // pred_fallthru
              _
          $region40: #{skip_upsample_forward.1} parent=35 // pred_fallthru
            _
          %306 = vnop
        $region36: #{skip_upsample_forward.1} parent=27 // pred_fallthru
          _
      $region28: #{skip_upsample_forward.1} parent=5 // pred_fallthru
        _
      %p307 = scmp.le.s32.totalorder 1, %s11
      %p308 = scmp.lt.s32.totalorder %s11, 5
      %p309 = pnand %p307, %p308
      %p310 = pneg %p309
      // Predicated region
      $region71: #{skip_upsample_forward.1} parent=5 // pred_check
        _
      $region72: #{skip_upsample_forward.1} parent=5 // pred_check_branch
        %312 = sbr.rel (%p309) target = $region74
      $region73: #{skip_upsample_forward.1} parent=5 // pred_region
        %s313 = ssub.s32 %s11, 1
        %s314 = sand.u32 %s64, 1
        %s315 = sand.u32 %s64, 1
        %s316 = smul.addr %s315, 128
        %s317 = scalar_lea.vmem [#allocation2], %s316
        // Predicated region
        $region75: #{skip_upsample_forward.1} parent=73 // pred_check
          %p318 = pneg %p77
        $region76: #{skip_upsample_forward.1} parent=73 // pred_check_branch
          %320 = sbr.rel (%p318) target = $region78
        $region77: #{skip_upsample_forward.1} parent=73 // pred_region
          _
        $region78: #{skip_upsample_forward.1} parent=73 // pred_fallthru
          _
        %p321 = scmp.lt.s32.totalorder %s20, 1
        %s322 = scalar_select %p321, %s20, 1
        %s323 = smul.addr %s322, 64
        %s324 = smul.addr %s323, 8
        %s325 = scalar_lea.vmem %s0, %s324
        %p326 = pneg %p49
        %p327 = pneg %p46
        %s328 = sand.u32 %s64, 1
        %s329 = sand.u32 %s64, 1
        %s330 = smul.addr %s329, 128
        %s331 = scalar_lea.vmem [#allocation2], %s330
        %p332 = pneg %p77
        %p333 = pneg %p74
        %p334 = pneg %p98
        %p335 = pneg %p95
        %p336 = pneg %p119
        %p337 = pneg %p116
        %p338 = pneg %p140
        %p339 = pneg %p137
        %p340 = pneg %p168
        %p341 = pneg %p165
        %s342 = sand.u32 %s155, 1
        %s343 = sand.u32 %s155, 1
        %s344 = smul.addr %s343, 128
        %s345 = scalar_lea.vmem [#allocation3], %s344
        %p346 = scmp.lt.s32.totalorder %s20, 1
        %s347 = scalar_select %p346, %s20, 1
        %s348 = smul.addr %s347, 64
        %s349 = smul.addr %s348, 8
        %s350 = scalar_lea.vmem %s0, %s349
        %s351 = smul.u32 %s21, 8
        %s352 = ssub.s32 %s351, 1
        %p353 = scmp.gt.s32.totalorder %s352, 0
        %s354 = scalar_select %p353, %s352, 0
        %s355 = sadd.s32 %s351, 8
        %p356 = scmp.lt.s32.totalorder %s355, 15
        %s357 = scalar_select %p356, %s355, 15
        %v358 = vld [vmem:[%s2] sm:$0xff]
        %v359 = vld [vmem:[%s2 + $0x8] sm:$0xff]
        %v360 = vld [vmem:[%s3] sm:$0xff]
        %v361 = vld [vmem:[%s3 + $0x8] sm:$0xff]
        %v362 = vld [vmem:[%s3 + $0x10] sm:$0xff]
        %v363 = vld [vmem:[%s3 + $0x18] sm:$0xff]
        %v364 = vld [vmem:[%s3 + $0x20] sm:$0xff]
        %v365 = vld [vmem:[%s3 + $0x28] sm:$0xff]
        %v366 = vld [vmem:[%s3 + $0x30] sm:$0xff]
        %v367 = vld [vmem:[%s3 + $0x38] sm:$0xff]
        %v368 = vld [vmem:[%s3 + $0x40] sm:$0xff]
        %v369 = vld [vmem:[%s3 + $0x48] sm:$0xff]
        %v370 = vld [vmem:[%s3 + $0x50] sm:$0xff]
        %v371 = vld [vmem:[%s3 + $0x58] sm:$0xff]
        %v372 = vld [vmem:[%s3 + $0x60] sm:$0xff]
        %v373 = vld [vmem:[%s3 + $0x68] sm:$0xff]
        %v374 = vld [vmem:[%s3 + $0x70] sm:$0xff]
        %v375 = vld [vmem:[%s3 + $0x78] sm:$0xff]
        %v376 = vld [vmem:[%s3 + $0x80] sm:$0xff]
        %v377 = vld [vmem:[%s3 + $0x88] sm:$0xff]
        %v378 = vld [vmem:[%s3 + $0x90] sm:$0xff]
        %v379 = vld [vmem:[%s3 + $0x98] sm:$0xff]
        %v380 = vld [vmem:[%s3 + $0xa0] sm:$0xff]
        %v381 = vld [vmem:[%s3 + $0xa8] sm:$0xff]
        %v382 = vld [vmem:[%s3 + $0xb0] sm:$0xff]
        %v383 = vld [vmem:[%s3 + $0xb8] sm:$0xff]
        %v384 = vld [vmem:[%s3 + $0xc0] sm:$0xff]
        %v385 = vld [vmem:[%s3 + $0xc8] sm:$0xff]
        %v386 = vld [vmem:[%s3 + $0xd0] sm:$0xff]
        %v387 = vld [vmem:[%s3 + $0xd8] sm:$0xff]
        %v388 = vld [vmem:[%s3 + $0xe0] sm:$0xff]
        %v389 = vld [vmem:[%s3 + $0xe8] sm:$0xff]
        %v390 = vld [vmem:[%s3 + $0xf0] sm:$0xff]
        %v391 = vld [vmem:[%s3 + $0xf8] sm:$0xff]
        %s392 = scalar_lea.vmem %s350, %s354
        %v393 = vld [vmem:[%s392] sm:$0x1]
        %v394 = vld [vmem:[%s392 + $0x10] sm:$0x1]
        %v395 = vld [vmem:[%s392 + $0x20] sm:$0x1]
        %v396 = vld [vmem:[%s392 + $0x30] sm:$0x1]
        %v397 = vld [vmem:[%s392 + $0x40] sm:$0x1]
        %v398 = vld [vmem:[%s392 + $0x50] sm:$0x1]
        %v399 = vld [vmem:[%s392 + $0x60] sm:$0x1]
        %v400 = vld [vmem:[%s392 + $0x70] sm:$0x1]
        %v401 = vld [vmem:[%s392 + $0x80] sm:$0x1]
        %v402 = vld [vmem:[%s392 + $0x90] sm:$0x1]
        %v403 = vld [vmem:[%s392 + $0xa0] sm:$0x1]
        %v404 = vld [vmem:[%s392 + $0xb0] sm:$0x1]
        %v405 = vld [vmem:[%s392 + $0xc0] sm:$0x1]
        %v406 = vld [vmem:[%s392 + $0xd0] sm:$0x1]
        %v407 = vld [vmem:[%s392 + $0xe0] sm:$0x1]
        %v408 = vld [vmem:[%s392 + $0xf0] sm:$0x1]
        %v409 = vld [vmem:[%s392 + $0x100] sm:$0x1]
        %v410 = vld [vmem:[%s392 + $0x110] sm:$0x1]
        %v411 = vld [vmem:[%s392 + $0x120] sm:$0x1]
        %v412 = vld [vmem:[%s392 + $0x130] sm:$0x1]
        %v413 = vld [vmem:[%s392 + $0x140] sm:$0x1]
        %v414 = vld [vmem:[%s392 + $0x150] sm:$0x1]
        %v415 = vld [vmem:[%s392 + $0x160] sm:$0x1]
        %v416 = vld [vmem:[%s392 + $0x170] sm:$0x1]
        %v417 = vld [vmem:[%s392 + $0x180] sm:$0x1]
        %v418 = vld [vmem:[%s392 + $0x190] sm:$0x1]
        %v419 = vld [vmem:[%s392 + $0x1a0] sm:$0x1]
        %v420 = vld [vmem:[%s392 + $0x1b0] sm:$0x1]
        %v421 = vld [vmem:[%s392 + $0x1c0] sm:$0x1]
        %v422 = vld [vmem:[%s392 + $0x1d0] sm:$0x1]
        %v423 = vld [vmem:[%s392 + $0x1e0] sm:$0x1]
        %v424 = vld [vmem:[%s392 + $0x1f0] sm:$0x1]
        %v457 = vrot.slane %v394, 7
        %vm458 = vcmask 1041409
        %v459 = vsel %vm458, %v457, %v393
        %v460 = vrot.slane %v395, 6
        %vm461 = vcmask 1042434
        %v462 = vsel %vm461, %v460, %v459
        %v463 = vrot.slane %v396, 5
        %vm464 = vcmask 1043459
        %v465 = vsel %vm464, %v463, %v462
        %v466 = vrot.slane %v397, 4
        %vm467 = vcmask 1044484
        %v468 = vsel %vm467, %v466, %v465
        %v469 = vrot.slane %v398, 3
        %vm470 = vcmask 1045509
        %v471 = vsel %vm470, %v469, %v468
        %v472 = vrot.slane %v399, 2
        %vm473 = vcmask 1046534
        %v474 = vsel %vm473, %v472, %v471
        %v475 = vrot.slane %v400, 1
        %vm476 = vcmask 1047559
        %v477 = vsel %vm476, %v475, %v474
        %v478 = vrot.slane %v402, 7
        %v479 = vsel %vm458, %v478, %v401
        %v480 = vrot.slane %v403, 6
        %v481 = vsel %vm461, %v480, %v479
        %v482 = vrot.slane %v404, 5
        %v483 = vsel %vm464, %v482, %v481
        %v484 = vrot.slane %v405, 4
        %v485 = vsel %vm467, %v484, %v483
        %v486 = vrot.slane %v406, 3
        %v487 = vsel %vm470, %v486, %v485
        %v488 = vrot.slane %v407, 2
        %v489 = vsel %vm473, %v488, %v487
        %v490 = vrot.slane %v408, 1
        %v491 = vsel %vm476, %v490, %v489
        %v492 = vrot.slane %v410, 7
        %v493 = vsel %vm458, %v492, %v409
        %v494 = vrot.slane %v411, 6
        %v495 = vsel %vm461, %v494, %v493
        %v496 = vrot.slane %v412, 5
        %v497 = vsel %vm464, %v496, %v495
        %v498 = vrot.slane %v413, 4
        %v499 = vsel %vm467, %v498, %v497
        %v500 = vrot.slane %v414, 3
        %v501 = vsel %vm470, %v500, %v499
        %v502 = vrot.slane %v415, 2
        %v503 = vsel %vm473, %v502, %v501
        %v504 = vrot.slane %v416, 1
        %v505 = vsel %vm476, %v504, %v503
        %v506 = vrot.slane %v418, 7
        %v507 = vsel %vm458, %v506, %v417
        %v508 = vrot.slane %v419, 6
        %v509 = vsel %vm461, %v508, %v507
        %v510 = vrot.slane %v420, 5
        %v511 = vsel %vm464, %v510, %v509
        %v512 = vrot.slane %v421, 4
        %v513 = vsel %vm467, %v512, %v511
        %v514 = vrot.slane %v422, 3
        %v515 = vsel %vm470, %v514, %v513
        %v516 = vrot.slane %v423, 2
        %v517 = vsel %vm473, %v516, %v515
        %v518 = vrot.slane %v424, 1
        %v519 = vsel %vm476, %v518, %v517
        %vm524 = vcmask 261120
        %v526 = vsel %vm524, %v358, 0
        %v529 = vsel %vm524, %v359, 0
        %531 = vmatprep.subr.mxu0 0.0
        %532 = vmatpush1.msra.mxu0 %v477
        %533 = vmatprep.subr.mxu0 0.0
        %534 = vmatpush1.msra.mxu0 %v491
        %535 = vmatprep.subr.mxu0 0.0
        %536 = vmatpush1.msra.mxu0 %v505
        %537 = vmatprep.subr.mxu0 0.0
        %538 = vmatpush1.msra.mxu0 %v519
        %539 = vmatprep.subr.mxu0 0.0
        %540 = vmatpush1.msra.mxu0 0.0
        %541 = vmatprep.subr.mxu0 0.0
        %542 = vmatpush1.msra.mxu0 0.0
        %543 = vmatprep.subr.mxu0 0.0
        %544 = vmatpush1.msra.mxu0 0.0
        %545 = vmatprep.subr.mxu0 0.0
        %546 = vmatpush1.msra.mxu0 0.0
        %547 = vmatprep.subr.mxu0 0.0
        %548 = vmatpush1.msra.mxu0 0.0
        %549 = vmatprep.subr.mxu0 0.0
        %550 = vmatpush1.msra.mxu0 0.0
        %551 = vmatprep.subr.mxu0 0.0
        %552 = vmatpush1.msra.mxu0 0.0
        %553 = vmatprep.subr.mxu0 0.0
        %554 = vmatpush1.msra.mxu0 0.0
        %555 = vmatprep.subr.mxu0 0.0
        %556 = vmatpush1.msra.mxu0 0.0
        %557 = vmatprep.subr.mxu0 0.0
        %558 = vmatpush1.msra.mxu0 0.0
        %559 = vmatprep.subr.mxu0 0.0
        %560 = vmatpush1.msra.mxu0 0.0
        %561 = vmatprep.subr.mxu0 0.0
        %562 = vmatpush1.msra.mxu0 0.0
        %563 = vmatprep.subr.mxu0 0.0
        %564 = vmatpush1.msra.mxu0 0.0
        %565 = vmatprep.subr.mxu0 0.0
        %566 = vmatpush1.msra.mxu0 0.0
        %567 = vmatprep.subr.mxu0 0.0
        %568 = vmatpush1.msra.mxu0 0.0
        %569 = vmatprep.subr.mxu0 0.0
        %570 = vmatpush1.msra.mxu0 0.0
        %571 = vmatprep.subr.mxu0 0.0
        %572 = vmatpush1.msra.mxu0 0.0
        %573 = vmatprep.subr.mxu0 0.0
        %574 = vmatpush1.msra.mxu0 0.0
        %575 = vmatprep.subr.mxu0 0.0
        %576 = vmatpush1.msra.mxu0 0.0
        %577 = vmatprep.subr.mxu0 0.0
        %578 = vmatpush1.msra.mxu0 0.0
        %579 = vmatprep.subr.mxu0 0.0
        %580 = vmatpush1.msra.mxu0 0.0
        %581 = vmatprep.subr.mxu0 0.0
        %582 = vmatpush1.msra.mxu0 0.0
        %583 = vmatprep.subr.mxu0 0.0
        %584 = vmatpush1.msra.mxu0 0.0
        %585 = vmatprep.subr.mxu0 0.0
        %586 = vmatpush1.msra.mxu0 0.0
        %587 = vmatprep.subr.mxu0 0.0
        %588 = vmatpush1.msra.mxu0 0.0
        %589 = vmatprep.subr.mxu0 0.0
        %590 = vmatpush1.msra.mxu0 0.0
        %591 = vmatprep.subr.mxu0 0.0
        %592 = vmatpush1.msra.mxu0 0.0
        %593 = vmatprep.subr.mxu0 0.0
        %594 = vmatpush1.msra.mxu0 0.0
        %595 = vmatprep.mubr.f32.mxu0 0.0
        %596 = vmatmul.mubr.f32.gmra.mrb[0].mxu0 %v526
        %v597 = vpop.f32.mrb[0].mxu0
        %v598 = vadd.f32 0.0, %v597
        %v599 = vpop.f32.mrb[0].mxu0
        %600 = vmatprep.mubr.f32.mxu0 0.0
        %601 = vmatmul.mubr.f32.gmra.mrb[0].mxu0 %v529
        %v602 = vpop.f32.mrb[0].mxu0
        %v603 = vadd.f32 0.0, %v602
        %v604 = vpop.f32.mrb[0].mxu0
        %605 = vdwg.mxu0
        %v608 = vcombine.high %v598, %v598
        %v610 = vunpack.c.l.s4 1966171168
        %v611 = vunpack.c.0.s8 %v610
        %v612 = vlaneseq
        %v613 = vshrl.u32 %v612, 7
        %v614 = vsub.s32 %v611, %v613
        %v615 = vrot.slane %v598, %v614
        %v617 = vunpack.c.l.s4 1966171168
        %v618 = vunpack.c.0.s8 %v617
        %v619 = vlaneseq
        %v620 = vshrl.u32 %v619, 7
        %v621 = vsub.s32 %v618, %v620
        %v622 = vrot.slane %v608, %v621
        %v623 = vcombine.high %v615, %v615
        %v624 = vcombine.high %v622, %v622
        %v626 = vunpack.c.l.s4 1966171168
        %v627 = vunpack.c.0.s8 %v626
        %v628 = vlaneseq
        %v629 = vshrl.u32 %v628, 7
        %v630 = vsub.s32 %v627, %v629
        %v631 = vrot.slane %v615, %v630
        %v633 = vunpack.c.l.s4 1966171168
        %v634 = vunpack.c.0.s8 %v633
        %v635 = vlaneseq
        %v636 = vshrl.u32 %v635, 7
        %v637 = vsub.s32 %v634, %v636
        %v638 = vrot.slane %v622, %v637
        %v640 = vunpack.c.l.s4 1966171168
        %v641 = vunpack.c.0.s8 %v640
        %v642 = vlaneseq
        %v643 = vshrl.u32 %v642, 7
        %v644 = vsub.s32 %v641, %v643
        %v645 = vrot.slane %v623, %v644
        %v647 = vunpack.c.l.s4 1966171168
        %v648 = vunpack.c.0.s8 %v647
        %v649 = vlaneseq
        %v650 = vshrl.u32 %v649, 7
        %v651 = vsub.s32 %v648, %v650
        %v652 = vrot.slane %v624, %v651
        %v653 = vcombine.high %v631, %v631
        %v654 = vcombine.high %v638, %v638
        %v655 = vcombine.high %v645, %v645
        %v656 = vcombine.high %v652, %v652
        %v657 = vcombine.high %v603, %v603
        %v659 = vunpack.c.l.s4 1966171168
        %v660 = vunpack.c.0.s8 %v659
        %v661 = vlaneseq
        %v662 = vshrl.u32 %v661, 7
        %v663 = vsub.s32 %v660, %v662
        %v664 = vrot.slane %v603, %v663
        %v666 = vunpack.c.l.s4 1966171168
        %v667 = vunpack.c.0.s8 %v666
        %v668 = vlaneseq
        %v669 = vshrl.u32 %v668, 7
        %v670 = vsub.s32 %v667, %v669
        %v671 = vrot.slane %v657, %v670
        %v672 = vcombine.high %v664, %v664
        %v673 = vcombine.high %v671, %v671
        %v675 = vunpack.c.l.s4 1966171168
        %v676 = vunpack.c.0.s8 %v675
        %v677 = vlaneseq
        %v678 = vshrl.u32 %v677, 7
        %v679 = vsub.s32 %v676, %v678
        %v680 = vrot.slane %v664, %v679
        %v682 = vunpack.c.l.s4 1966171168
        %v683 = vunpack.c.0.s8 %v682
        %v684 = vlaneseq
        %v685 = vshrl.u32 %v684, 7
        %v686 = vsub.s32 %v683, %v685
        %v687 = vrot.slane %v671, %v686
        %v689 = vunpack.c.l.s4 1966171168
        %v690 = vunpack.c.0.s8 %v689
        %v691 = vlaneseq
        %v692 = vshrl.u32 %v691, 7
        %v693 = vsub.s32 %v690, %v692
        %v694 = vrot.slane %v672, %v693
        %v696 = vunpack.c.l.s4 1966171168
        %v697 = vunpack.c.0.s8 %v696
        %v698 = vlaneseq
        %v699 = vshrl.u32 %v698, 7
        %v700 = vsub.s32 %v697, %v699
        %v701 = vrot.slane %v673, %v700
        %v702 = vcombine.high %v680, %v680
        %v703 = vcombine.high %v687, %v687
        %v704 = vcombine.high %v694, %v694
        %v705 = vcombine.high %v701, %v701
        %s722 = scalar_lea.vmem %s350, %s351
        %v723 = vld [vmem:[%s722] sm:$0xff]
        %v724 = vld [vmem:[%s722 + $0x10] sm:$0xff]
        %v725 = vld [vmem:[%s722 + $0x20] sm:$0xff]
        %v726 = vld [vmem:[%s722 + $0x30] sm:$0xff]
        %v727 = vld [vmem:[%s722 + $0x40] sm:$0xff]
        %v728 = vld [vmem:[%s722 + $0x50] sm:$0xff]
        %v729 = vld [vmem:[%s722 + $0x60] sm:$0xff]
        %v730 = vld [vmem:[%s722 + $0x70] sm:$0xff]
        %v731 = vld [vmem:[%s722 + $0x80] sm:$0xff]
        %v732 = vld [vmem:[%s722 + $0x90] sm:$0xff]
        %v733 = vld [vmem:[%s722 + $0xa0] sm:$0xff]
        %v734 = vld [vmem:[%s722 + $0xb0] sm:$0xff]
        %v735 = vld [vmem:[%s722 + $0xc0] sm:$0xff]
        %v736 = vld [vmem:[%s722 + $0xd0] sm:$0xff]
        %v737 = vld [vmem:[%s722 + $0xe0] sm:$0xff]
        %v738 = vld [vmem:[%s722 + $0xf0] sm:$0xff]
        %v739 = vld [vmem:[%s722 + $0x100] sm:$0xff]
        %v740 = vld [vmem:[%s722 + $0x110] sm:$0xff]
        %v741 = vld [vmem:[%s722 + $0x120] sm:$0xff]
        %v742 = vld [vmem:[%s722 + $0x130] sm:$0xff]
        %v743 = vld [vmem:[%s722 + $0x140] sm:$0xff]
        %v744 = vld [vmem:[%s722 + $0x150] sm:$0xff]
        %v745 = vld [vmem:[%s722 + $0x160] sm:$0xff]
        %v746 = vld [vmem:[%s722 + $0x170] sm:$0xff]
        %v747 = vld [vmem:[%s722 + $0x180] sm:$0xff]
        %v748 = vld [vmem:[%s722 + $0x190] sm:$0xff]
        %v749 = vld [vmem:[%s722 + $0x1a0] sm:$0xff]
        %v750 = vld [vmem:[%s722 + $0x1b0] sm:$0xff]
        %v751 = vld [vmem:[%s722 + $0x1c0] sm:$0xff]
        %v752 = vld [vmem:[%s722 + $0x1d0] sm:$0xff]
        %v753 = vld [vmem:[%s722 + $0x1e0] sm:$0xff]
        %v754 = vld [vmem:[%s722 + $0x1f0] sm:$0xff]
        %755 = vmatprep.subr.mxu0 0.0
        %756 = vmatpush1.msra.mxu0 %v723
        %757 = vmatprep.subr.mxu0 0.0
        %758 = vmatpush1.msra.mxu0 %v724
        %759 = vmatprep.subr.mxu0 0.0
        %760 = vmatpush1.msra.mxu0 %v725
        %761 = vmatprep.subr.mxu0 0.0
        %762 = vmatpush1.msra.mxu0 %v726
        %763 = vmatprep.subr.mxu0 0.0
        %764 = vmatpush1.msra.mxu0 %v727
        %765 = vmatprep.subr.mxu0 0.0
        %766 = vmatpush1.msra.mxu0 %v728
        %767 = vmatprep.subr.mxu0 0.0
        %768 = vmatpush1.msra.mxu0 %v729
        %769 = vmatprep.subr.mxu0 0.0
        %770 = vmatpush1.msra.mxu0 %v730
        %771 = vmatprep.subr.mxu0 0.0
        %772 = vmatpush1.msra.mxu0 %v731
        %773 = vmatprep.subr.mxu0 0.0
        %774 = vmatpush1.msra.mxu0 %v732
        %775 = vmatprep.subr.mxu0 0.0
        %776 = vmatpush1.msra.mxu0 %v733
        %777 = vmatprep.subr.mxu0 0.0
        %778 = vmatpush1.msra.mxu0 %v734
        %779 = vmatprep.subr.mxu0 0.0
        %780 = vmatpush1.msra.mxu0 %v735
        %781 = vmatprep.subr.mxu0 0.0
        %782 = vmatpush1.msra.mxu0 %v736
        %783 = vmatprep.subr.mxu0 0.0
        %784 = vmatpush1.msra.mxu0 %v737
        %785 = vmatprep.subr.mxu0 0.0
        %786 = vmatpush1.msra.mxu0 %v738
        %787 = vmatprep.subr.mxu0 0.0
        %788 = vmatpush1.msra.mxu0 %v739
        %789 = vmatprep.subr.mxu0 0.0
        %790 = vmatpush1.msra.mxu0 %v740
        %791 = vmatprep.subr.mxu0 0.0
        %792 = vmatpush1.msra.mxu0 %v741
        %793 = vmatprep.subr.mxu0 0.0
        %794 = vmatpush1.msra.mxu0 %v742
        %795 = vmatprep.subr.mxu0 0.0
        %796 = vmatpush1.msra.mxu0 %v743
        %797 = vmatprep.subr.mxu0 0.0
        %798 = vmatpush1.msra.mxu0 %v744
        %799 = vmatprep.subr.mxu0 0.0
        %800 = vmatpush1.msra.mxu0 %v745
        %801 = vmatprep.subr.mxu0 0.0
        %802 = vmatpush1.msra.mxu0 %v746
        %803 = vmatprep.subr.mxu0 0.0
        %804 = vmatpush1.msra.mxu0 %v747
        %805 = vmatprep.subr.mxu0 0.0
        %806 = vmatpush1.msra.mxu0 %v748
        %807 = vmatprep.subr.mxu0 0.0
        %808 = vmatpush1.msra.mxu0 %v749
        %809 = vmatprep.subr.mxu0 0.0
        %810 = vmatpush1.msra.mxu0 %v750
        %811 = vmatprep.subr.mxu0 0.0
        %812 = vmatpush1.msra.mxu0 %v751
        %813 = vmatprep.subr.mxu0 0.0
        %814 = vmatpush1.msra.mxu0 %v752
        %815 = vmatprep.subr.mxu0 0.0
        %816 = vmatpush1.msra.mxu0 %v753
        %817 = vmatprep.subr.mxu0 0.0
        %818 = vmatpush1.msra.mxu0 %v754
        %819 = vmatprep.mubr.f32.mxu0 %v361
        %820 = vmatmul.mubr.f32.gmra.mrb[0].mxu0 %v360
        %v821 = vpop.f32.mrb[0].mxu0
        %v822 = vadd.f32 0.0, %v821
        %v823 = vpop.f32.mrb[0].mxu0
        %824 = vmatprep.mubr.f32.mxu0 %v363
        %825 = vmatmul.mubr.f32.gmra.mrb[0].mxu0 %v362
        %v826 = vpop.f32.mrb[0].mxu0
        %v827 = vadd.f32 0.0, %v826
        %v828 = vpop.f32.mrb[0].mxu0
        %829 = vmatprep.mubr.f32.mxu0 %v365
        %830 = vmatmul.mubr.f32.gmra.mrb[0].mxu0 %v364
        %v831 = vpop.f32.mrb[0].mxu0
        %v832 = vadd.f32 0.0, %v831
        %v833 = vpop.f32.mrb[0].mxu0
        %834 = vmatprep.mubr.f32.mxu0 %v367
        %835 = vmatmul.mubr.f32.gmra.mrb[0].mxu0 %v366
        %v836 = vpop.f32.mrb[0].mxu0
        %v837 = vadd.f32 0.0, %v836
        %v838 = vpop.f32.mrb[0].mxu0
        %839 = vmatprep.mubr.f32.mxu0 %v369
        %840 = vmatmul.mubr.f32.gmra.mrb[0].mxu0 %v368
        %v841 = vpop.f32.mrb[0].mxu0
        %v842 = vadd.f32 0.0, %v841
        %v843 = vpop.f32.mrb[0].mxu0
        %844 = vmatprep.mubr.f32.mxu0 %v371
        %845 = vmatmul.mubr.f32.gmra.mrb[0].mxu0 %v370
        %v846 = vpop.f32.mrb[0].mxu0
        %v847 = vadd.f32 0.0, %v846
        %v848 = vpop.f32.mrb[0].mxu0
        %849 = vmatprep.mubr.f32.mxu0 %v373
        %850 = vmatmul.mubr.f32.gmra.mrb[0].mxu0 %v372
        %v851 = vpop.f32.mrb[0].mxu0
        %v852 = vadd.f32 0.0, %v851
        %v853 = vpop.f32.mrb[0].mxu0
        %854 = vmatprep.mubr.f32.mxu0 %v375
        %855 = vmatmul.mubr.f32.gmra.mrb[0].mxu0 %v374
        %v856 = vpop.f32.mrb[0].mxu0
        %v857 = vadd.f32 0.0, %v856
        %v858 = vpop.f32.mrb[0].mxu0
        %859 = vmatprep.mubr.f32.mxu0 %v377
        %860 = vmatmul.mubr.f32.gmra.mrb[0].mxu0 %v376
        %v861 = vpop.f32.mrb[0].mxu0
        %v862 = vadd.f32 0.0, %v861
        %v863 = vpop.f32.mrb[0].mxu0
        %864 = vmatprep.mubr.f32.mxu0 %v379
        %865 = vmatmul.mubr.f32.gmra.mrb[0].mxu0 %v378
        %v866 = vpop.f32.mrb[0].mxu0
        %v867 = vadd.f32 0.0, %v866
        %v868 = vpop.f32.mrb[0].mxu0
        %869 = vmatprep.mubr.f32.mxu0 %v381
        %870 = vmatmul.mubr.f32.gmra.mrb[0].mxu0 %v380
        %v871 = vpop.f32.mrb[0].mxu0
        %v872 = vadd.f32 0.0, %v871
        %v873 = vpop.f32.mrb[0].mxu0
        %874 = vmatprep.mubr.f32.mxu0 %v383
        %875 = vmatmul.mubr.f32.gmra.mrb[0].mxu0 %v382
        %v876 = vpop.f32.mrb[0].mxu0
        %v877 = vadd.f32 0.0, %v876
        %v878 = vpop.f32.mrb[0].mxu0
        %879 = vmatprep.mubr.f32.mxu0 %v385
        %880 = vmatmul.mubr.f32.gmra.mrb[0].mxu0 %v384
        %v881 = vpop.f32.mrb[0].mxu0
        %v882 = vadd.f32 0.0, %v881
        %v883 = vpop.f32.mrb[0].mxu0
        %884 = vmatprep.mubr.f32.mxu0 %v387
        %885 = vmatmul.mubr.f32.gmra.mrb[0].mxu0 %v386
        %v886 = vpop.f32.mrb[0].mxu0
        %v887 = vadd.f32 0.0, %v886
        %v888 = vpop.f32.mrb[0].mxu0
        %889 = vmatprep.mubr.f32.mxu0 %v389
        %890 = vmatmul.mubr.f32.gmra.mrb[0].mxu0 %v388
        %v891 = vpop.f32.mrb[0].mxu0
        %v892 = vadd.f32 0.0, %v891
        %v893 = vpop.f32.mrb[0].mxu0
        %894 = vmatprep.mubr.f32.mxu0 %v391
        %895 = vmatmul.mubr.f32.gmra.mrb[0].mxu0 %v390
        %v896 = vpop.f32.mrb[0].mxu0
        %v897 = vadd.f32 0.0, %v896
        %v898 = vpop.f32.mrb[0].mxu0
        %899 = vdwg.mxu0
        %s900 = scalar_lea.vmem %s350, %s357
        %v901 = vld [vmem:[%s900] sm:$0x1]
        %v902 = vld [vmem:[%s900 + $0x10] sm:$0x1]
        %v903 = vld [vmem:[%s900 + $0x20] sm:$0x1]
        %v904 = vld [vmem:[%s900 + $0x30] sm:$0x1]
        %v905 = vld [vmem:[%s900 + $0x40] sm:$0x1]
        %v906 = vld [vmem:[%s900 + $0x50] sm:$0x1]
        %v907 = vld [vmem:[%s900 + $0x60] sm:$0x1]
        %v908 = vld [vmem:[%s900 + $0x70] sm:$0x1]
        %v909 = vld [vmem:[%s900 + $0x80] sm:$0x1]
        %v910 = vld [vmem:[%s900 + $0x90] sm:$0x1]
        %v911 = vld [vmem:[%s900 + $0xa0] sm:$0x1]
        %v912 = vld [vmem:[%s900 + $0xb0] sm:$0x1]
        %v913 = vld [vmem:[%s900 + $0xc0] sm:$0x1]
        %v914 = vld [vmem:[%s900 + $0xd0] sm:$0x1]
        %v915 = vld [vmem:[%s900 + $0xe0] sm:$0x1]
        %v916 = vld [vmem:[%s900 + $0xf0] sm:$0x1]
        %v917 = vld [vmem:[%s900 + $0x100] sm:$0x1]
        %v918 = vld [vmem:[%s900 + $0x110] sm:$0x1]
        %v919 = vld [vmem:[%s900 + $0x120] sm:$0x1]
        %v920 = vld [vmem:[%s900 + $0x130] sm:$0x1]
        %v921 = vld [vmem:[%s900 + $0x140] sm:$0x1]
        %v922 = vld [vmem:[%s900 + $0x150] sm:$0x1]
        %v923 = vld [vmem:[%s900 + $0x160] sm:$0x1]
        %v924 = vld [vmem:[%s900 + $0x170] sm:$0x1]
        %v925 = vld [vmem:[%s900 + $0x180] sm:$0x1]
        %v926 = vld [vmem:[%s900 + $0x190] sm:$0x1]
        %v927 = vld [vmem:[%s900 + $0x1a0] sm:$0x1]
        %v928 = vld [vmem:[%s900 + $0x1b0] sm:$0x1]
        %v929 = vld [vmem:[%s900 + $0x1c0] sm:$0x1]
        %v930 = vld [vmem:[%s900 + $0x1d0] sm:$0x1]
        %v931 = vld [vmem:[%s900 + $0x1e0] sm:$0x1]
        %v932 = vld [vmem:[%s900 + $0x1f0] sm:$0x1]
        %v965 = vrot.slane %v902, 7
        %v966 = vsel %vm458, %v965, %v901
        %v967 = vrot.slane %v903, 6
        %v968 = vsel %vm461, %v967, %v966
        %v969 = vrot.slane %v904, 5
        %v970 = vsel %vm464, %v969, %v968
        %v971 = vrot.slane %v905, 4
        %v972 = vsel %vm467, %v971, %v970
        %v973 = vrot.slane %v906, 3
        %v974 = vsel %vm470, %v973, %v972
        %v975 = vrot.slane %v907, 2
        %v976 = vsel %vm473, %v975, %v974
        %v977 = vrot.slane %v908, 1
        %v978 = vsel %vm476, %v977, %v976
        %v979 = vrot.slane %v910, 7
        %v980 = vsel %vm458, %v979, %v909
        %v981 = vrot.slane %v911, 6
        %v982 = vsel %vm461, %v981, %v980
        %v983 = vrot.slane %v912, 5
        %v984 = vsel %vm464, %v983, %v982
        %v985 = vrot.slane %v913, 4
        %v986 = vsel %vm467, %v985, %v984
        %v987 = vrot.slane %v914, 3
        %v988 = vsel %vm470, %v987, %v986
        %v989 = vrot.slane %v915, 2
        %v990 = vsel %vm473, %v989, %v988
        %v991 = vrot.slane %v916, 1
        %v992 = vsel %vm476, %v991, %v990
        %v993 = vrot.slane %v918, 7
        %v994 = vsel %vm458, %v993, %v917
        %v995 = vrot.slane %v919, 6
        %v996 = vsel %vm461, %v995, %v994
        %v997 = vrot.slane %v920, 5
        %v998 = vsel %vm464, %v997, %v996
        %v999 = vrot.slane %v921, 4
        %v1000 = vsel %vm467, %v999, %v998
        %v1001 = vrot.slane %v922, 3
        %v1002 = vsel %vm470, %v1001, %v1000
        %v1003 = vrot.slane %v923, 2
        %v1004 = vsel %vm473, %v1003, %v1002
        %v1005 = vrot.slane %v924, 1
        %v1006 = vsel %vm476, %v1005, %v1004
        %v1007 = vrot.slane %v926, 7
        %v1008 = vsel %vm458, %v1007, %v925
        %v1009 = vrot.slane %v927, 6
        %v1010 = vsel %vm461, %v1009, %v1008
        %v1011 = vrot.slane %v928, 5
        %v1012 = vsel %vm464, %v1011, %v1010
        %v1013 = vrot.slane %v929, 4
        %v1014 = vsel %vm467, %v1013, %v1012
        %v1015 = vrot.slane %v930, 3
        %v1016 = vsel %vm470, %v1015, %v1014
        %v1017 = vrot.slane %v931, 2
        %v1018 = vsel %vm473, %v1017, %v1016
        %v1019 = vrot.slane %v932, 1
        %v1020 = vsel %vm476, %v1019, %v1018
        %1025 = vmatprep.subr.mxu0 0.0
        %1026 = vmatpush1.msra.mxu0 %v978
        %1027 = vmatprep.subr.mxu0 0.0
        %1028 = vmatpush1.msra.mxu0 %v992
        %1029 = vmatprep.subr.mxu0 0.0
        %1030 = vmatpush1.msra.mxu0 %v1006
        %1031 = vmatprep.subr.mxu0 0.0
        %1032 = vmatpush1.msra.mxu0 %v1020
        %1033 = vmatprep.subr.mxu0 0.0
        %1034 = vmatpush1.msra.mxu0 0.0
        %1035 = vmatprep.subr.mxu0 0.0
        %1036 = vmatpush1.msra.mxu0 0.0
        %1037 = vmatprep.subr.mxu0 0.0
        %1038 = vmatpush1.msra.mxu0 0.0
        %1039 = vmatprep.subr.mxu0 0.0
        %1040 = vmatpush1.msra.mxu0 0.0
        %1041 = vmatprep.subr.mxu0 0.0
        %1042 = vmatpush1.msra.mxu0 0.0
        %1043 = vmatprep.subr.mxu0 0.0
        %1044 = vmatpush1.msra.mxu0 0.0
        %1045 = vmatprep.subr.mxu0 0.0
        %1046 = vmatpush1.msra.mxu0 0.0
        %1047 = vmatprep.subr.mxu0 0.0
        %1048 = vmatpush1.msra.mxu0 0.0
        %1049 = vmatprep.subr.mxu0 0.0
        %1050 = vmatpush1.msra.mxu0 0.0
        %1051 = vmatprep.subr.mxu0 0.0
        %1052 = vmatpush1.msra.mxu0 0.0
        %1053 = vmatprep.subr.mxu0 0.0
        %1054 = vmatpush1.msra.mxu0 0.0
        %1055 = vmatprep.subr.mxu0 0.0
        %1056 = vmatpush1.msra.mxu0 0.0
        %1057 = vmatprep.subr.mxu0 0.0
        %1058 = vmatpush1.msra.mxu0 0.0
        %1059 = vmatprep.subr.mxu0 0.0
        %1060 = vmatpush1.msra.mxu0 0.0
        %1061 = vmatprep.subr.mxu0 0.0
        %1062 = vmatpush1.msra.mxu0 0.0
        %1063 = vmatprep.subr.mxu0 0.0
        %1064 = vmatpush1.msra.mxu0 0.0
        %1065 = vmatprep.subr.mxu0 0.0
        %1066 = vmatpush1.msra.mxu0 0.0
        %1067 = vmatprep.subr.mxu0 0.0
        %1068 = vmatpush1.msra.mxu0 0.0
        %1069 = vmatprep.subr.mxu0 0.0
        %1070 = vmatpush1.msra.mxu0 0.0
        %1071 = vmatprep.subr.mxu0 0.0
        %1072 = vmatpush1.msra.mxu0 0.0
        %1073 = vmatprep.subr.mxu0 0.0
        %1074 = vmatpush1.msra.mxu0 0.0
        %1075 = vmatprep.subr.mxu0 0.0
        %1076 = vmatpush1.msra.mxu0 0.0
        %1077 = vmatprep.subr.mxu0 0.0
        %1078 = vmatpush1.msra.mxu0 0.0
        %1079 = vmatprep.subr.mxu0 0.0
        %1080 = vmatpush1.msra.mxu0 0.0
        %1081 = vmatprep.subr.mxu0 0.0
        %1082 = vmatpush1.msra.mxu0 0.0
        %1083 = vmatprep.subr.mxu0 0.0
        %1084 = vmatpush1.msra.mxu0 0.0
        %1085 = vmatprep.subr.mxu0 0.0
        %1086 = vmatpush1.msra.mxu0 0.0
        %1087 = vmatprep.subr.mxu0 0.0
        %1088 = vmatpush1.msra.mxu0 0.0
        %1089 = vmatprep.mubr.f32.mxu0 0.0
        %1090 = vmatmul.mubr.f32.gmra.mrb[0].mxu0 %v526
        %v1091 = vpop.f32.mrb[0].mxu0
        %v1092 = vadd.f32 0.0, %v1091
        %v1093 = vpop.f32.mrb[0].mxu0
        %1094 = vmatprep.mubr.f32.mxu0 0.0
        %1095 = vmatmul.mubr.f32.gmra.mrb[0].mxu0 %v529
        %v1096 = vpop.f32.mrb[0].mxu0
        %v1097 = vadd.f32 0.0, %v1096
        %v1098 = vpop.f32.mrb[0].mxu0
        %1099 = vdwg.mxu0
        %v1102 = vcombine.high %v1092, %v1092
        %v1104 = vunpack.c.l.s4 1966171168
        %v1105 = vunpack.c.0.s8 %v1104
        %v1106 = vlaneseq
        %v1107 = vshrl.u32 %v1106, 7
        %v1108 = vsub.s32 %v1105, %v1107
        %v1109 = vrot.slane %v1092, %v1108
        %v1111 = vunpack.c.l.s4 1966171168
        %v1112 = vunpack.c.0.s8 %v1111
        %v1113 = vlaneseq
        %v1114 = vshrl.u32 %v1113, 7
        %v1115 = vsub.s32 %v1112, %v1114
        %v1116 = vrot.slane %v1102, %v1115
        %v1117 = vcombine.high %v1109, %v1109
        %v1118 = vcombine.high %v1116, %v1116
        %v1120 = vunpack.c.l.s4 1966171168
        %v1121 = vunpack.c.0.s8 %v1120
        %v1122 = vlaneseq
        %v1123 = vshrl.u32 %v1122, 7
        %v1124 = vsub.s32 %v1121, %v1123
        %v1125 = vrot.slane %v1109, %v1124
        %v1127 = vunpack.c.l.s4 1966171168
        %v1128 = vunpack.c.0.s8 %v1127
        %v1129 = vlaneseq
        %v1130 = vshrl.u32 %v1129, 7
        %v1131 = vsub.s32 %v1128, %v1130
        %v1132 = vrot.slane %v1116, %v1131
        %v1134 = vunpack.c.l.s4 1966171168
        %v1135 = vunpack.c.0.s8 %v1134
        %v1136 = vlaneseq
        %v1137 = vshrl.u32 %v1136, 7
        %v1138 = vsub.s32 %v1135, %v1137
        %v1139 = vrot.slane %v1117, %v1138
        %v1141 = vunpack.c.l.s4 1966171168
        %v1142 = vunpack.c.0.s8 %v1141
        %v1143 = vlaneseq
        %v1144 = vshrl.u32 %v1143, 7
        %v1145 = vsub.s32 %v1142, %v1144
        %v1146 = vrot.slane %v1118, %v1145
        %v1147 = vcombine.high %v1125, %v1125
        %v1148 = vcombine.high %v1132, %v1132
        %v1149 = vcombine.high %v1139, %v1139
        %v1150 = vcombine.high %v1146, %v1146
        %v1151 = vcombine.high %v1097, %v1097
        %v1153 = vunpack.c.l.s4 1966171168
        %v1154 = vunpack.c.0.s8 %v1153
        %v1155 = vlaneseq
        %v1156 = vshrl.u32 %v1155, 7
        %v1157 = vsub.s32 %v1154, %v1156
        %v1158 = vrot.slane %v1097, %v1157
        %v1160 = vunpack.c.l.s4 1966171168
        %v1161 = vunpack.c.0.s8 %v1160
        %v1162 = vlaneseq
        %v1163 = vshrl.u32 %v1162, 7
        %v1164 = vsub.s32 %v1161, %v1163
        %v1165 = vrot.slane %v1151, %v1164
        %v1166 = vcombine.high %v1158, %v1158
        %v1167 = vcombine.high %v1165, %v1165
        %v1169 = vunpack.c.l.s4 1966171168
        %v1170 = vunpack.c.0.s8 %v1169
        %v1171 = vlaneseq
        %v1172 = vshrl.u32 %v1171, 7
        %v1173 = vsub.s32 %v1170, %v1172
        %v1174 = vrot.slane %v1158, %v1173
        %v1176 = vunpack.c.l.s4 1966171168
        %v1177 = vunpack.c.0.s8 %v1176
        %v1178 = vlaneseq
        %v1179 = vshrl.u32 %v1178, 7
        %v1180 = vsub.s32 %v1177, %v1179
        %v1181 = vrot.slane %v1165, %v1180
        %v1183 = vunpack.c.l.s4 1966171168
        %v1184 = vunpack.c.0.s8 %v1183
        %v1185 = vlaneseq
        %v1186 = vshrl.u32 %v1185, 7
        %v1187 = vsub.s32 %v1184, %v1186
        %v1188 = vrot.slane %v1166, %v1187
        %v1190 = vunpack.c.l.s4 1966171168
        %v1191 = vunpack.c.0.s8 %v1190
        %v1192 = vlaneseq
        %v1193 = vshrl.u32 %v1192, 7
        %v1194 = vsub.s32 %v1191, %v1193
        %v1195 = vrot.slane %v1167, %v1194
        %v1196 = vcombine.high %v1174, %v1174
        %v1197 = vcombine.high %v1181, %v1181
        %v1198 = vcombine.high %v1188, %v1188
        %v1199 = vcombine.high %v1195, %v1195
        %v1216 = vrot.slane %v822, 7
        %v1217 = vrot.slane %v827, 7
        %v1218 = vrot.slane %v832, 7
        %v1219 = vrot.slane %v837, 7
        %v1220 = vrot.slane %v842, 7
        %v1221 = vrot.slane %v847, 7
        %v1222 = vrot.slane %v852, 7
        %v1223 = vrot.slane %v857, 7
        %v1224 = vrot.slane %v862, 7
        %v1225 = vrot.slane %v867, 7
        %v1226 = vrot.slane %v872, 7
        %v1227 = vrot.slane %v877, 7
        %v1228 = vrot.slane %v882, 7
        %v1229 = vrot.slane %v887, 7
        %v1230 = vrot.slane %v892, 7
        %v1231 = vrot.slane %v897, 7
        %v1248 = vlaneseq
        %v1249 = vshrl.u32 %v1248, 7
        %v1250 = vsub.s32 0, %v1249
        %v1251 = vrot.slane %v1125, %v1250
        %v1252 = vlaneseq
        %v1253 = vshrl.u32 %v1252, 7
        %v1254 = vsub.s32 0, %v1253
        %v1255 = vrot.slane %v1139, %v1254
        %v1256 = vlaneseq
        %v1257 = vshrl.u32 %v1256, 7
        %v1258 = vsub.s32 0, %v1257
        %v1259 = vrot.slane %v1147, %v1258
        %v1260 = vlaneseq
        %v1261 = vshrl.u32 %v1260, 7
        %v1262 = vsub.s32 0, %v1261
        %v1263 = vrot.slane %v1149, %v1262
        %v1264 = vlaneseq
        %v1265 = vshrl.u32 %v1264, 7
        %v1266 = vsub.s32 0, %v1265
        %v1267 = vrot.slane %v1132, %v1266
        %v1268 = vlaneseq
        %v1269 = vshrl.u32 %v1268, 7
        %v1270 = vsub.s32 0, %v1269
        %v1271 = vrot.slane %v1146, %v1270
        %v1272 = vlaneseq
        %v1273 = vshrl.u32 %v1272, 7
        %v1274 = vsub.s32 0, %v1273
        %v1275 = vrot.slane %v1148, %v1274
        %v1276 = vlaneseq
        %v1277 = vshrl.u32 %v1276, 7
        %v1278 = vsub.s32 0, %v1277
        %v1279 = vrot.slane %v1150, %v1278
        %v1280 = vlaneseq
        %v1281 = vshrl.u32 %v1280, 7
        %v1282 = vsub.s32 0, %v1281
        %v1283 = vrot.slane %v1174, %v1282
        %v1284 = vlaneseq
        %v1285 = vshrl.u32 %v1284, 7
        %v1286 = vsub.s32 0, %v1285
        %v1287 = vrot.slane %v1188, %v1286
        %v1288 = vlaneseq
        %v1289 = vshrl.u32 %v1288, 7
        %v1290 = vsub.s32 0, %v1289
        %v1291 = vrot.slane %v1196, %v1290
        %v1292 = vlaneseq
        %v1293 = vshrl.u32 %v1292, 7
        %v1294 = vsub.s32 0, %v1293
        %v1295 = vrot.slane %v1198, %v1294
        %v1296 = vlaneseq
        %v1297 = vshrl.u32 %v1296, 7
        %v1298 = vsub.s32 0, %v1297
        %v1299 = vrot.slane %v1181, %v1298
        %v1300 = vlaneseq
        %v1301 = vshrl.u32 %v1300, 7
        %v1302 = vsub.s32 0, %v1301
        %v1303 = vrot.slane %v1195, %v1302
        %v1304 = vlaneseq
        %v1305 = vshrl.u32 %v1304, 7
        %v1306 = vsub.s32 0, %v1305
        %v1307 = vrot.slane %v1197, %v1306
        %v1308 = vlaneseq
        %v1309 = vshrl.u32 %v1308, 7
        %v1310 = vsub.s32 0, %v1309
        %v1311 = vrot.slane %v1199, %v1310
        %vm1328 = vcmask 1040384
        %v1329 = vsel %vm1328, %v631, %v1216
        %v1330 = vsel %vm1328, %v645, %v1217
        %v1331 = vsel %vm1328, %v653, %v1218
        %v1332 = vsel %vm1328, %v655, %v1219
        %v1333 = vsel %vm1328, %v638, %v1220
        %v1334 = vsel %vm1328, %v652, %v1221
        %v1335 = vsel %vm1328, %v654, %v1222
        %v1336 = vsel %vm1328, %v656, %v1223
        %v1337 = vsel %vm1328, %v680, %v1224
        %v1338 = vsel %vm1328, %v694, %v1225
        %v1339 = vsel %vm1328, %v702, %v1226
        %v1340 = vsel %vm1328, %v704, %v1227
        %v1341 = vsel %vm1328, %v687, %v1228
        %v1342 = vsel %vm1328, %v701, %v1229
        %v1343 = vsel %vm1328, %v703, %v1230
        %v1344 = vsel %vm1328, %v705, %v1231
        %v1345 = vsel %vm1328, %v1216, %v1251
        %v1346 = vsel %vm1328, %v1217, %v1255
        %v1347 = vsel %vm1328, %v1218, %v1259
        %v1348 = vsel %vm1328, %v1219, %v1263
        %v1349 = vsel %vm1328, %v1220, %v1267
        %v1350 = vsel %vm1328, %v1221, %v1271
        %v1351 = vsel %vm1328, %v1222, %v1275
        %v1352 = vsel %vm1328, %v1223, %v1279
        %v1353 = vsel %vm1328, %v1224, %v1283
        %v1354 = vsel %vm1328, %v1225, %v1287
        %v1355 = vsel %vm1328, %v1226, %v1291
        %v1356 = vsel %vm1328, %v1227, %v1295
        %v1357 = vsel %vm1328, %v1228, %v1299
        %v1358 = vsel %vm1328, %v1229, %v1303
        %v1359 = vsel %vm1328, %v1230, %v1307
        %v1360 = vsel %vm1328, %v1231, %v1311
        %v1361 = vmul.f32 %v1329, 0.25
        %v1362 = vmul.f32 %v1330, 0.25
        %v1363 = vmul.f32 %v1331, 0.25
        %v1364 = vmul.f32 %v1332, 0.25
        %v1365 = vmul.f32 %v1333, 0.25
        %v1366 = vmul.f32 %v1334, 0.25
        %v1367 = vmul.f32 %v1335, 0.25
        %v1368 = vmul.f32 %v1336, 0.25
        %v1369 = vmul.f32 %v1337, 0.25
        %v1370 = vmul.f32 %v1338, 0.25
        %v1371 = vmul.f32 %v1339, 0.25
        %v1372 = vmul.f32 %v1340, 0.25
        %v1373 = vmul.f32 %v1341, 0.25
        %v1374 = vmul.f32 %v1342, 0.25
        %v1375 = vmul.f32 %v1343, 0.25
        %v1376 = vmul.f32 %v1344, 0.25
        %v1377 = vmul.f32 %v1329, 0.75
        %v1378 = vmul.f32 %v1345, 0.75
        %v1379 = vmul.f32 %v1330, 0.75
        %v1380 = vmul.f32 %v1346, 0.75
        %v1381 = vmul.f32 %v1331, 0.75
        %v1382 = vmul.f32 %v1347, 0.75
        %v1383 = vmul.f32 %v1332, 0.75
        %v1384 = vmul.f32 %v1348, 0.75
        %v1385 = vmul.f32 %v1333, 0.75
        %v1386 = vmul.f32 %v1349, 0.75
        %v1387 = vmul.f32 %v1334, 0.75
        %v1388 = vmul.f32 %v1350, 0.75
        %v1389 = vmul.f32 %v1335, 0.75
        %v1390 = vmul.f32 %v1351, 0.75
        %v1391 = vmul.f32 %v1336, 0.75
        %v1392 = vmul.f32 %v1352, 0.75
        %v1393 = vmul.f32 %v1337, 0.75
        %v1394 = vmul.f32 %v1353, 0.75
        %v1395 = vmul.f32 %v1338, 0.75
        %v1396 = vmul.f32 %v1354, 0.75
        %v1397 = vmul.f32 %v1339, 0.75
        %v1398 = vmul.f32 %v1355, 0.75
        %v1399 = vmul.f32 %v1340, 0.75
        %v1400 = vmul.f32 %v1356, 0.75
        %v1401 = vmul.f32 %v1341, 0.75
        %v1402 = vmul.f32 %v1357, 0.75
        %v1403 = vmul.f32 %v1342, 0.75
        %v1404 = vmul.f32 %v1358, 0.75
        %v1405 = vmul.f32 %v1343, 0.75
        %v1406 = vmul.f32 %v1359, 0.75
        %v1407 = vmul.f32 %v1344, 0.75
        %v1408 = vmul.f32 %v1360, 0.75
        %vm1441 = vcmask 1046528
        %v1442 = vrot.slane %v1377, 1
        %v1443 = vrot.slane %v1378, 1
        %v1444 = vsel %vm1441, %v1442, %v1443
        %v1445 = vrot.slane %v1379, 1
        %v1446 = vrot.slane %v1380, 1
        %v1447 = vsel %vm1441, %v1445, %v1446
        %v1448 = vrot.slane %v1381, 1
        %v1449 = vrot.slane %v1382, 1
        %v1450 = vsel %vm1441, %v1448, %v1449
        %v1451 = vrot.slane %v1383, 1
        %v1452 = vrot.slane %v1384, 1
        %v1453 = vsel %vm1441, %v1451, %v1452
        %v1454 = vrot.slane %v1385, 1
        %v1455 = vrot.slane %v1386, 1
        %v1456 = vsel %vm1441, %v1454, %v1455
        %v1457 = vrot.slane %v1387, 1
        %v1458 = vrot.slane %v1388, 1
        %v1459 = vsel %vm1441, %v1457, %v1458
        %v1460 = vrot.slane %v1389, 1
        %v1461 = vrot.slane %v1390, 1
        %v1462 = vsel %vm1441, %v1460, %v1461
        %v1463 = vrot.slane %v1391, 1
        %v1464 = vrot.slane %v1392, 1
        %v1465 = vsel %vm1441, %v1463, %v1464
        %v1466 = vrot.slane %v1393, 1
        %v1467 = vrot.slane %v1394, 1
        %v1468 = vsel %vm1441, %v1466, %v1467
        %v1469 = vrot.slane %v1395, 1
        %v1470 = vrot.slane %v1396, 1
        %v1471 = vsel %vm1441, %v1469, %v1470
        %v1472 = vrot.slane %v1397, 1
        %v1473 = vrot.slane %v1398, 1
        %v1474 = vsel %vm1441, %v1472, %v1473
        %v1475 = vrot.slane %v1399, 1
        %v1476 = vrot.slane %v1400, 1
        %v1477 = vsel %vm1441, %v1475, %v1476
        %v1478 = vrot.slane %v1401, 1
        %v1479 = vrot.slane %v1402, 1
        %v1480 = vsel %vm1441, %v1478, %v1479
        %v1481 = vrot.slane %v1403, 1
        %v1482 = vrot.slane %v1404, 1
        %v1483 = vsel %vm1441, %v1481, %v1482
        %v1484 = vrot.slane %v1405, 1
        %v1485 = vrot.slane %v1406, 1
        %v1486 = vsel %vm1441, %v1484, %v1485
        %v1487 = vrot.slane %v1407, 1
        %v1488 = vrot.slane %v1408, 1
        %v1489 = vsel %vm1441, %v1487, %v1488
        %v1506 = vadd.f32 %v1361, %v1444
        %v1507 = vadd.f32 %v1362, %v1447
        %v1508 = vadd.f32 %v1363, %v1450
        %v1509 = vadd.f32 %v1364, %v1453
        %v1510 = vadd.f32 %v1365, %v1456
        %v1511 = vadd.f32 %v1366, %v1459
        %v1512 = vadd.f32 %v1367, %v1462
        %v1513 = vadd.f32 %v1368, %v1465
        %v1514 = vadd.f32 %v1369, %v1468
        %v1515 = vadd.f32 %v1370, %v1471
        %v1516 = vadd.f32 %v1371, %v1474
        %v1517 = vadd.f32 %v1372, %v1477
        %v1518 = vadd.f32 %v1373, %v1480
        %v1519 = vadd.f32 %v1374, %v1483
        %v1520 = vadd.f32 %v1375, %v1486
        %v1521 = vadd.f32 %v1376, %v1489
        %v1522 = vmul.f32 %v1345, 0.25
        %v1523 = vmul.f32 %v1346, 0.25
        %v1524 = vmul.f32 %v1347, 0.25
        %v1525 = vmul.f32 %v1348, 0.25
        %v1526 = vmul.f32 %v1349, 0.25
        %v1527 = vmul.f32 %v1350, 0.25
        %v1528 = vmul.f32 %v1351, 0.25
        %v1529 = vmul.f32 %v1352, 0.25
        %v1530 = vmul.f32 %v1353, 0.25
        %v1531 = vmul.f32 %v1354, 0.25
        %v1532 = vmul.f32 %v1355, 0.25
        %v1533 = vmul.f32 %v1356, 0.25
        %v1534 = vmul.f32 %v1357, 0.25
        %v1535 = vmul.f32 %v1358, 0.25
        %v1536 = vmul.f32 %v1359, 0.25
        %v1537 = vmul.f32 %v1360, 0.25
        %v1570 = vrot.slane %v1361, 1
        %v1571 = vrot.slane %v1522, 1
        %v1572 = vsel %vm1441, %v1570, %v1571
        %v1573 = vrot.slane %v1362, 1
        %v1574 = vrot.slane %v1523, 1
        %v1575 = vsel %vm1441, %v1573, %v1574
        %v1576 = vrot.slane %v1363, 1
        %v1577 = vrot.slane %v1524, 1
        %v1578 = vsel %vm1441, %v1576, %v1577
        %v1579 = vrot.slane %v1364, 1
        %v1580 = vrot.slane %v1525, 1
        %v1581 = vsel %vm1441, %v1579, %v1580
        %v1582 = vrot.slane %v1365, 1
        %v1583 = vrot.slane %v1526, 1
        %v1584 = vsel %vm1441, %v1582, %v1583
        %v1585 = vrot.slane %v1366, 1
        %v1586 = vrot.slane %v1527, 1
        %v1587 = vsel %vm1441, %v1585, %v1586
        %v1588 = vrot.slane %v1367, 1
        %v1589 = vrot.slane %v1528, 1
        %v1590 = vsel %vm1441, %v1588, %v1589
        %v1591 = vrot.slane %v1368, 1
        %v1592 = vrot.slane %v1529, 1
        %v1593 = vsel %vm1441, %v1591, %v1592
        %v1594 = vrot.slane %v1369, 1
        %v1595 = vrot.slane %v1530, 1
        %v1596 = vsel %vm1441, %v1594, %v1595
        %v1597 = vrot.slane %v1370, 1
        %v1598 = vrot.slane %v1531, 1
        %v1599 = vsel %vm1441, %v1597, %v1598
        %v1600 = vrot.slane %v1371, 1
        %v1601 = vrot.slane %v1532, 1
        %v1602 = vsel %vm1441, %v1600, %v1601
        %v1603 = vrot.slane %v1372, 1
        %v1604 = vrot.slane %v1533, 1
        %v1605 = vsel %vm1441, %v1603, %v1604
        %v1606 = vrot.slane %v1373, 1
        %v1607 = vrot.slane %v1534, 1
        %v1608 = vsel %vm1441, %v1606, %v1607
        %v1609 = vrot.slane %v1374, 1
        %v1610 = vrot.slane %v1535, 1
        %v1611 = vsel %vm1441, %v1609, %v1610
        %v1612 = vrot.slane %v1375, 1
        %v1613 = vrot.slane %v1536, 1
        %v1614 = vsel %vm1441, %v1612, %v1613
        %v1615 = vrot.slane %v1376, 1
        %v1616 = vrot.slane %v1537, 1
        %v1617 = vsel %vm1441, %v1615, %v1616
        %v1650 = vadd.f32 %v1377, %v1572
        %v1651 = vadd.f32 %v1378, %v1571
        %v1652 = vadd.f32 %v1379, %v1575
        %v1653 = vadd.f32 %v1380, %v1574
        %v1654 = vadd.f32 %v1381, %v1578
        %v1655 = vadd.f32 %v1382, %v1577
        %v1656 = vadd.f32 %v1383, %v1581
        %v1657 = vadd.f32 %v1384, %v1580
        %v1658 = vadd.f32 %v1385, %v1584
        %v1659 = vadd.f32 %v1386, %v1583
        %v1660 = vadd.f32 %v1387, %v1587
        %v1661 = vadd.f32 %v1388, %v1586
        %v1662 = vadd.f32 %v1389, %v1590
        %v1663 = vadd.f32 %v1390, %v1589
        %v1664 = vadd.f32 %v1391, %v1593
        %v1665 = vadd.f32 %v1392, %v1592
        %v1666 = vadd.f32 %v1393, %v1596
        %v1667 = vadd.f32 %v1394, %v1595
        %v1668 = vadd.f32 %v1395, %v1599
        %v1669 = vadd.f32 %v1396, %v1598
        %v1670 = vadd.f32 %v1397, %v1602
        %v1671 = vadd.f32 %v1398, %v1601
        %v1672 = vadd.f32 %v1399, %v1605
        %v1673 = vadd.f32 %v1400, %v1604
        %v1674 = vadd.f32 %v1401, %v1608
        %v1675 = vadd.f32 %v1402, %v1607
        %v1676 = vadd.f32 %v1403, %v1611
        %v1677 = vadd.f32 %v1404, %v1610
        %v1678 = vadd.f32 %v1405, %v1614
        %v1679 = vadd.f32 %v1406, %v1613
        %v1680 = vadd.f32 %v1407, %v1617
        %v1681 = vadd.f32 %v1408, %v1616
        %v1714 = vrot.slane %v1650, 1
        %v1715 = vrot.slane %v1651, 1
        %v1716 = vsel %vm1441, %v1714, %v1715
        %v1717 = vrot.slane %v1652, 1
        %v1718 = vrot.slane %v1653, 1
        %v1719 = vsel %vm1441, %v1717, %v1718
        %v1720 = vrot.slane %v1654, 1
        %v1721 = vrot.slane %v1655, 1
        %v1722 = vsel %vm1441, %v1720, %v1721
        %v1723 = vrot.slane %v1656, 1
        %v1724 = vrot.slane %v1657, 1
        %v1725 = vsel %vm1441, %v1723, %v1724
        %v1726 = vrot.slane %v1658, 1
        %v1727 = vrot.slane %v1659, 1
        %v1728 = vsel %vm1441, %v1726, %v1727
        %v1729 = vrot.slane %v1660, 1
        %v1730 = vrot.slane %v1661, 1
        %v1731 = vsel %vm1441, %v1729, %v1730
        %v1732 = vrot.slane %v1662, 1
        %v1733 = vrot.slane %v1663, 1
        %v1734 = vsel %vm1441, %v1732, %v1733
        %v1735 = vrot.slane %v1664, 1
        %v1736 = vrot.slane %v1665, 1
        %v1737 = vsel %vm1441, %v1735, %v1736
        %v1738 = vrot.slane %v1666, 1
        %v1739 = vrot.slane %v1667, 1
        %v1740 = vsel %vm1441, %v1738, %v1739
        %v1741 = vrot.slane %v1668, 1
        %v1742 = vrot.slane %v1669, 1
        %v1743 = vsel %vm1441, %v1741, %v1742
        %v1744 = vrot.slane %v1670, 1
        %v1745 = vrot.slane %v1671, 1
        %v1746 = vsel %vm1441, %v1744, %v1745
        %v1747 = vrot.slane %v1672, 1
        %v1748 = vrot.slane %v1673, 1
        %v1749 = vsel %vm1441, %v1747, %v1748
        %v1750 = vrot.slane %v1674, 1
        %v1751 = vrot.slane %v1675, 1
        %v1752 = vsel %vm1441, %v1750, %v1751
        %v1753 = vrot.slane %v1676, 1
        %v1754 = vrot.slane %v1677, 1
        %v1755 = vsel %vm1441, %v1753, %v1754
        %v1756 = vrot.slane %v1678, 1
        %v1757 = vrot.slane %v1679, 1
        %v1758 = vsel %vm1441, %v1756, %v1757
        %v1759 = vrot.slane %v1680, 1
        %v1760 = vrot.slane %v1681, 1
        %v1761 = vsel %vm1441, %v1759, %v1760
        %v1762 = vld [vmem:[%s4] sm:$0xff]
        %v1763 = vld [vmem:[%s4 + $0x8] sm:$0xff]
        %vm1764 = vcmask 130048
        %v1766 = vsel %vm1764, %v1506, 0
        %v1769 = vsel %vm1764, %v1507, 0
        %v1772 = vsel %vm1764, %v1508, 0
        %v1775 = vsel %vm1764, %v1509, 0
        %v1778 = vsel %vm1764, %v1510, 0
        %v1781 = vsel %vm1764, %v1511, 0
        %v1784 = vsel %vm1764, %v1512, 0
        %v1787 = vsel %vm1764, %v1513, 0
        %v1790 = vsel %vm1764, %v1514, 0
        %v1793 = vsel %vm1764, %v1515, 0
        %v1796 = vsel %vm1764, %v1516, 0
        %v1799 = vsel %vm1764, %v1517, 0
        %v1802 = vsel %vm1764, %v1518, 0
        %v1805 = vsel %vm1764, %v1519, 0
        %v1808 = vsel %vm1764, %v1520, 0
        %v1811 = vsel %vm1764, %v1521, 0
        %v1813 = vsel %vm1764, %v1716, 0
        %v1815 = vsel %vm1764, %v1719, 0
        %v1817 = vsel %vm1764, %v1722, 0
        %v1819 = vsel %vm1764, %v1725, 0
        %v1821 = vsel %vm1764, %v1728, 0
        %v1823 = vsel %vm1764, %v1731, 0
        %v1825 = vsel %vm1764, %v1734, 0
        %v1827 = vsel %vm1764, %v1737, 0
        %v1829 = vsel %vm1764, %v1740, 0
        %v1831 = vsel %vm1764, %v1743, 0
        %v1833 = vsel %vm1764, %v1746, 0
        %v1835 = vsel %vm1764, %v1749, 0
        %v1837 = vsel %vm1764, %v1752, 0
        %v1839 = vsel %vm1764, %v1755, 0
        %v1841 = vsel %vm1764, %v1758, 0
        %v1843 = vsel %vm1764, %v1761, 0
        %1845 = vmatprep.subr.mxu0 0.0
        %1846 = vmatpush1.msra.mxu0 %v1762
        %1847 = vmatprep.subr.mxu0 0.0
        %1848 = vmatpush1.msra.mxu0 %v1763
        %1849 = vmatprep.subr.mxu0 0.0
        %1850 = vmatpush1.msra.mxu0 0.0
        %1851 = vmatprep.subr.mxu0 0.0
        %1852 = vmatpush1.msra.mxu0 0.0
        %1853 = vmatprep.subr.mxu0 0.0
        %1854 = vmatpush1.msra.mxu0 0.0
        %1855 = vmatprep.subr.mxu0 0.0
        %1856 = vmatpush1.msra.mxu0 0.0
        %1857 = vmatprep.subr.mxu0 0.0
        %1858 = vmatpush1.msra.mxu0 0.0
        %1859 = vmatprep.subr.mxu0 0.0
        %1860 = vmatpush1.msra.mxu0 0.0
        %1861 = vmatprep.subr.mxu0 0.0
        %1862 = vmatpush1.msra.mxu0 0.0
        %1863 = vmatprep.subr.mxu0 0.0
        %1864 = vmatpush1.msra.mxu0 0.0
        %1865 = vmatprep.subr.mxu0 0.0
        %1866 = vmatpush1.msra.mxu0 0.0
        %1867 = vmatprep.subr.mxu0 0.0
        %1868 = vmatpush1.msra.mxu0 0.0
        %1869 = vmatprep.subr.mxu0 0.0
        %1870 = vmatpush1.msra.mxu0 0.0
        %1871 = vmatprep.subr.mxu0 0.0
        %1872 = vmatpush1.msra.mxu0 0.0
        %1873 = vmatprep.subr.mxu0 0.0
        %1874 = vmatpush1.msra.mxu0 0.0
        %1875 = vmatprep.subr.mxu0 0.0
        %1876 = vmatpush1.msra.mxu0 0.0
        %1877 = vmatprep.subr.mxu0 0.0
        %1878 = vmatpush1.msra.mxu0 0.0
        %1879 = vmatprep.subr.mxu0 0.0
        %1880 = vmatpush1.msra.mxu0 0.0
        %1881 = vmatprep.subr.mxu0 0.0
        %1882 = vmatpush1.msra.mxu0 0.0
        %1883 = vmatprep.subr.mxu0 0.0
        %1884 = vmatpush1.msra.mxu0 0.0
        %1885 = vmatprep.subr.mxu0 0.0
        %1886 = vmatpush1.msra.mxu0 0.0
        %1887 = vmatprep.subr.mxu0 0.0
        %1888 = vmatpush1.msra.mxu0 0.0
        %1889 = vmatprep.subr.mxu0 0.0
        %1890 = vmatpush1.msra.mxu0 0.0
        %1891 = vmatprep.subr.mxu0 0.0
        %1892 = vmatpush1.msra.mxu0 0.0
        %1893 = vmatprep.subr.mxu0 0.0
        %1894 = vmatpush1.msra.mxu0 0.0
        %1895 = vmatprep.subr.mxu0 0.0
        %1896 = vmatpush1.msra.mxu0 0.0
        %1897 = vmatprep.subr.mxu0 0.0
        %1898 = vmatpush1.msra.mxu0 0.0
        %1899 = vmatprep.subr.mxu0 0.0
        %1900 = vmatpush1.msra.mxu0 0.0
        %1901 = vmatprep.subr.mxu0 0.0
        %1902 = vmatpush1.msra.mxu0 0.0
        %1903 = vmatprep.subr.mxu0 0.0
        %1904 = vmatpush1.msra.mxu0 0.0
        %1905 = vmatprep.subr.mxu0 0.0
        %1906 = vmatpush1.msra.mxu0 0.0
        %1907 = vmatprep.subr.mxu0 0.0
        %1908 = vmatpush1.msra.mxu0 0.0
        %1909 = vmatprep.mubr.f32.mxu0 0.0
        %1910 = vmatmul.mubr.f32.gmra.mrb[0].mxu0 %v1766
        %v1911 = vpop.f32.mrb[0].mxu0
        %v1912 = vadd.f32 0.0, %v1911
        %v1913 = vpop.f32.mrb[0].mxu0
        %1914 = vmatprep.mubr.f32.mxu0 0.0
        %1915 = vmatmul.mubr.f32.gmra.mrb[0].mxu0 %v1769
        %v1916 = vpop.f32.mrb[0].mxu0
        %v1917 = vadd.f32 0.0, %v1916
        %v1918 = vpop.f32.mrb[0].mxu0
        %1919 = vmatprep.mubr.f32.mxu0 0.0
        %1920 = vmatmul.mubr.f32.gmra.mrb[0].mxu0 %v1772
        %v1921 = vpop.f32.mrb[0].mxu0
        %v1922 = vadd.f32 0.0, %v1921
        %v1923 = vpop.f32.mrb[0].mxu0
        %1924 = vmatprep.mubr.f32.mxu0 0.0
        %1925 = vmatmul.mubr.f32.gmra.mrb[0].mxu0 %v1775
        %v1926 = vpop.f32.mrb[0].mxu0
        %v1927 = vadd.f32 0.0, %v1926
        %v1928 = vpop.f32.mrb[0].mxu0
        %1929 = vmatprep.mubr.f32.mxu0 0.0
        %1930 = vmatmul.mubr.f32.gmra.mrb[0].mxu0 %v1778
        %v1931 = vpop.f32.mrb[0].mxu0
        %v1932 = vadd.f32 0.0, %v1931
        %v1933 = vpop.f32.mrb[0].mxu0
        %1934 = vmatprep.mubr.f32.mxu0 0.0
        %1935 = vmatmul.mubr.f32.gmra.mrb[0].mxu0 %v1781
        %v1936 = vpop.f32.mrb[0].mxu0
        %v1937 = vadd.f32 0.0, %v1936
        %v1938 = vpop.f32.mrb[0].mxu0
        %1939 = vmatprep.mubr.f32.mxu0 0.0
        %1940 = vmatmul.mubr.f32.gmra.mrb[0].mxu0 %v1784
        %v1941 = vpop.f32.mrb[0].mxu0
        %v1942 = vadd.f32 0.0, %v1941
        %v1943 = vpop.f32.mrb[0].mxu0
        %1944 = vmatprep.mubr.f32.mxu0 0.0
        %1945 = vmatmul.mubr.f32.gmra.mrb[0].mxu0 %v1787
        %v1946 = vpop.f32.mrb[0].mxu0
        %v1947 = vadd.f32 0.0, %v1946
        %v1948 = vpop.f32.mrb[0].mxu0
        %1949 = vmatprep.mubr.f32.mxu0 0.0
        %1950 = vmatmul.mubr.f32.gmra.mrb[0].mxu0 %v1790
        %v1951 = vpop.f32.mrb[0].mxu0
        %v1952 = vadd.f32 0.0, %v1951
        %v1953 = vpop.f32.mrb[0].mxu0
        %1954 = vmatprep.mubr.f32.mxu0 0.0
        %1955 = vmatmul.mubr.f32.gmra.mrb[0].mxu0 %v1793
        %v1956 = vpop.f32.mrb[0].mxu0
        %v1957 = vadd.f32 0.0, %v1956
        %v1958 = vpop.f32.mrb[0].mxu0
        %1959 = vmatprep.mubr.f32.mxu0 0.0
        %1960 = vmatmul.mubr.f32.gmra.mrb[0].mxu0 %v1796
        %v1961 = vpop.f32.mrb[0].mxu0
        %v1962 = vadd.f32 0.0, %v1961
        %v1963 = vpop.f32.mrb[0].mxu0
        %1964 = vmatprep.mubr.f32.mxu0 0.0
        %1965 = vmatmul.mubr.f32.gmra.mrb[0].mxu0 %v1799
        %v1966 = vpop.f32.mrb[0].mxu0
        %v1967 = vadd.f32 0.0, %v1966
        %v1968 = vpop.f32.mrb[0].mxu0
        %1969 = vmatprep.mubr.f32.mxu0 0.0
        %1970 = vmatmul.mubr.f32.gmra.mrb[0].mxu0 %v1802
        %v1971 = vpop.f32.mrb[0].mxu0
        %v1972 = vadd.f32 0.0, %v1971
        %v1973 = vpop.f32.mrb[0].mxu0
        %1974 = vmatprep.mubr.f32.mxu0 0.0
        %1975 = vmatmul.mubr.f32.gmra.mrb[0].mxu0 %v1805
        %v1976 = vpop.f32.mrb[0].mxu0
        %v1977 = vadd.f32 0.0, %v1976
        %v1978 = vpop.f32.mrb[0].mxu0
        %1979 = vmatprep.mubr.f32.mxu0 0.0
        %1980 = vmatmul.mubr.f32.gmra.mrb[0].mxu0 %v1808
        %v1981 = vpop.f32.mrb[0].mxu0
        %v1982 = vadd.f32 0.0, %v1981
        %v1983 = vpop.f32.mrb[0].mxu0
        %1984 = vmatprep.mubr.f32.mxu0 0.0
        %1985 = vmatmul.mubr.f32.gmra.mrb[0].mxu0 %v1811
        %v1986 = vpop.f32.mrb[0].mxu0
        %v1987 = vadd.f32 0.0, %v1986
        %v1988 = vpop.f32.mrb[0].mxu0
        %1989 = vmatprep.mubr.f32.mxu0 0.0
        %1990 = vmatmul.mubr.f32.gmra.mrb[0].mxu0 %v1813
        %v1991 = vpop.f32.mrb[0].mxu0
        %v1992 = vadd.f32 0.0, %v1991
        %v1993 = vpop.f32.mrb[0].mxu0
        %1994 = vmatprep.mubr.f32.mxu0 0.0
        %1995 = vmatmul.mubr.f32.gmra.mrb[0].mxu0 %v1815
        %v1996 = vpop.f32.mrb[0].mxu0
        %v1997 = vadd.f32 0.0, %v1996
        %v1998 = vpop.f32.mrb[0].mxu0
        %1999 = vmatprep.mubr.f32.mxu0 0.0
        %2000 = vmatmul.mubr.f32.gmra.mrb[0].mxu0 %v1817
        %v2001 = vpop.f32.mrb[0].mxu0
        %v2002 = vadd.f32 0.0, %v2001
        %v2003 = vpop.f32.mrb[0].mxu0
        %2004 = vmatprep.mubr.f32.mxu0 0.0
        %2005 = vmatmul.mubr.f32.gmra.mrb[0].mxu0 %v1819
        %v2006 = vpop.f32.mrb[0].mxu0
        %v2007 = vadd.f32 0.0, %v2006
        %v2008 = vpop.f32.mrb[0].mxu0
        %2009 = vmatprep.mubr.f32.mxu0 0.0
        %2010 = vmatmul.mubr.f32.gmra.mrb[0].mxu0 %v1821
        %v2011 = vpop.f32.mrb[0].mxu0
        %v2012 = vadd.f32 0.0, %v2011
        %v2013 = vpop.f32.mrb[0].mxu0
        %2014 = vmatprep.mubr.f32.mxu0 0.0
        %2015 = vmatmul.mubr.f32.gmra.mrb[0].mxu0 %v1823
        %v2016 = vpop.f32.mrb[0].mxu0
        %v2017 = vadd.f32 0.0, %v2016
        %v2018 = vpop.f32.mrb[0].mxu0
        %2019 = vmatprep.mubr.f32.mxu0 0.0
        %2020 = vmatmul.mubr.f32.gmra.mrb[0].mxu0 %v1825
        %v2021 = vpop.f32.mrb[0].mxu0
        %v2022 = vadd.f32 0.0, %v2021
        %v2023 = vpop.f32.mrb[0].mxu0
        %2024 = vmatprep.mubr.f32.mxu0 0.0
        %2025 = vmatmul.mubr.f32.gmra.mrb[0].mxu0 %v1827
        %v2026 = vpop.f32.mrb[0].mxu0
        %v2027 = vadd.f32 0.0, %v2026
        %v2028 = vpop.f32.mrb[0].mxu0
        %2029 = vmatprep.mubr.f32.mxu0 0.0
        %2030 = vmatmul.mubr.f32.gmra.mrb[0].mxu0 %v1829
        %v2031 = vpop.f32.mrb[0].mxu0
        %v2032 = vadd.f32 0.0, %v2031
        %v2033 = vpop.f32.mrb[0].mxu0
        %2034 = vmatprep.mubr.f32.mxu0 0.0
        %2035 = vmatmul.mubr.f32.gmra.mrb[0].mxu0 %v1831
        %v2036 = vpop.f32.mrb[0].mxu0
        %v2037 = vadd.f32 0.0, %v2036
        %v2038 = vpop.f32.mrb[0].mxu0
        %2039 = vmatprep.mubr.f32.mxu0 0.0
        %2040 = vmatmul.mubr.f32.gmra.mrb[0].mxu0 %v1833
        %v2041 = vpop.f32.mrb[0].mxu0
        %v2042 = vadd.f32 0.0, %v2041
        %v2043 = vpop.f32.mrb[0].mxu0
        %2044 = vmatprep.mubr.f32.mxu0 0.0
        %2045 = vmatmul.mubr.f32.gmra.mrb[0].mxu0 %v1835
        %v2046 = vpop.f32.mrb[0].mxu0
        %v2047 = vadd.f32 0.0, %v2046
        %v2048 = vpop.f32.mrb[0].mxu0
        %2049 = vmatprep.mubr.f32.mxu0 0.0
        %2050 = vmatmul.mubr.f32.gmra.mrb[0].mxu0 %v1837
        %v2051 = vpop.f32.mrb[0].mxu0
        %v2052 = vadd.f32 0.0, %v2051
        %v2053 = vpop.f32.mrb[0].mxu0
        %2054 = vmatprep.mubr.f32.mxu0 0.0
        %2055 = vmatmul.mubr.f32.gmra.mrb[0].mxu0 %v1839
        %v2056 = vpop.f32.mrb[0].mxu0
        %v2057 = vadd.f32 0.0, %v2056
        %v2058 = vpop.f32.mrb[0].mxu0
        %2059 = vmatprep.mubr.f32.mxu0 0.0
        %2060 = vmatmul.mubr.f32.gmra.mrb[0].mxu0 %v1841
        %v2061 = vpop.f32.mrb[0].mxu0
        %v2062 = vadd.f32 0.0, %v2061
        %v2063 = vpop.f32.mrb[0].mxu0
        %2064 = vmatprep.mubr.f32.mxu0 0.0
        %2065 = vmatmul.mubr.f32.gmra.mrb[0].mxu0 %v1843
        %v2066 = vpop.f32.mrb[0].mxu0
        %v2067 = vadd.f32 0.0, %v2066
        %v2068 = vpop.f32.mrb[0].mxu0
        %2069 = vdwg.mxu0
        %v2070 = vld [vmem:[%s317] sm:$0xff]
        %v2071 = vld [vmem:[%s317 + $0x8] sm:$0xff]
        %v2072 = vld [vmem:[%s317 + $0x10] sm:$0xff]
        %v2073 = vld [vmem:[%s317 + $0x18] sm:$0xff]
        %v2074 = vld [vmem:[%s317 + $0x20] sm:$0xff]
        %v2075 = vld [vmem:[%s317 + $0x28] sm:$0xff]
        %v2076 = vld [vmem:[%s317 + $0x30] sm:$0xff]
        %v2077 = vld [vmem:[%s317 + $0x38] sm:$0xff]
        %v2078 = vld [vmem:[%s317 + $0x40] sm:$0xff]
        %v2079 = vld [vmem:[%s317 + $0x48] sm:$0xff]
        %v2080 = vld [vmem:[%s317 + $0x50] sm:$0xff]
        %v2081 = vld [vmem:[%s317 + $0x58] sm:$0xff]
        %v2082 = vld [vmem:[%s317 + $0x60] sm:$0xff]
        %v2083 = vld [vmem:[%s317 + $0x68] sm:$0xff]
        %v2084 = vld [vmem:[%s317 + $0x70] sm:$0xff]
        %v2085 = vld [vmem:[%s317 + $0x78] sm:$0xff]
        %v2086 = vadd.f32 %v1912, %v2070
        %v2087 = vadd.f32 %v1917, %v2071
        %v2088 = vadd.f32 %v1922, %v2072
        %v2089 = vadd.f32 %v1927, %v2073
        %v2090 = vadd.f32 %v1932, %v2074
        %v2091 = vadd.f32 %v1937, %v2075
        %v2092 = vadd.f32 %v1942, %v2076
        %v2093 = vadd.f32 %v1947, %v2077
        %v2094 = vadd.f32 %v1952, %v2078
        %v2095 = vadd.f32 %v1957, %v2079
        %v2096 = vadd.f32 %v1962, %v2080
        %v2097 = vadd.f32 %v1967, %v2081
        %v2098 = vadd.f32 %v1972, %v2082
        %v2099 = vadd.f32 %v1977, %v2083
        %v2100 = vadd.f32 %v1982, %v2084
        %v2101 = vadd.f32 %v1987, %v2085
        %2102 = vst.msk [vmem:[%s345] sm:$0xff] %vm524, %v2086
        %2103 = vst.msk [vmem:[%s345 + $0x8] sm:$0xff] %vm524, %v2087
        %2104 = vst.msk [vmem:[%s345 + $0x10] sm:$0xff] %vm524, %v2088
        %2105 = vst.msk [vmem:[%s345 + $0x18] sm:$0xff] %vm524, %v2089
        %2106 = vst.msk [vmem:[%s345 + $0x20] sm:$0xff] %vm524, %v2090
        %2107 = vst.msk [vmem:[%s345 + $0x28] sm:$0xff] %vm524, %v2091
        %2108 = vst.msk [vmem:[%s345 + $0x30] sm:$0xff] %vm524, %v2092
        %2109 = vst.msk [vmem:[%s345 + $0x38] sm:$0xff] %vm524, %v2093
        %2110 = vst.msk [vmem:[%s345 + $0x40] sm:$0xff] %vm524, %v2094
        %2111 = vst.msk [vmem:[%s345 + $0x48] sm:$0xff] %vm524, %v2095
        %2112 = vst.msk [vmem:[%s345 + $0x50] sm:$0xff] %vm524, %v2096
        %2113 = vst.msk [vmem:[%s345 + $0x58] sm:$0xff] %vm524, %v2097
        %2114 = vst.msk [vmem:[%s345 + $0x60] sm:$0xff] %vm524, %v2098
        %2115 = vst.msk [vmem:[%s345 + $0x68] sm:$0xff] %vm524, %v2099
        %2116 = vst.msk [vmem:[%s345 + $0x70] sm:$0xff] %vm524, %v2100
        %2117 = vst.msk [vmem:[%s345 + $0x78] sm:$0xff] %vm524, %v2101
        %v2118 = vld [vmem:[%s317] sm:$0xff]
        %v2119 = vld [vmem:[%s317 + $0x8] sm:$0xff]
        %v2120 = vld [vmem:[%s317 + $0x10] sm:$0xff]
        %v2121 = vld [vmem:[%s317 + $0x18] sm:$0xff]
        %v2122 = vld [vmem:[%s317 + $0x20] sm:$0xff]
        %v2123 = vld [vmem:[%s317 + $0x28] sm:$0xff]
        %v2124 = vld [vmem:[%s317 + $0x30] sm:$0xff]
        %v2125 = vld [vmem:[%s317 + $0x38] sm:$0xff]
        %v2126 = vld [vmem:[%s317 + $0x40] sm:$0xff]
        %v2127 = vld [vmem:[%s317 + $0x48] sm:$0xff]
        %v2128 = vld [vmem:[%s317 + $0x50] sm:$0xff]
        %v2129 = vld [vmem:[%s317 + $0x58] sm:$0xff]
        %v2130 = vld [vmem:[%s317 + $0x60] sm:$0xff]
        %v2131 = vld [vmem:[%s317 + $0x68] sm:$0xff]
        %v2132 = vld [vmem:[%s317 + $0x70] sm:$0xff]
        %v2133 = vld [vmem:[%s317 + $0x78] sm:$0xff]
        %2150 = vrot.lane.b32.xlu0 %v2118, 96
        %v2151 = vpop.permute.xlu0 %2150
        %2152 = vrot.lane.b32.xlu0 %v2119, 96
        %v2153 = vpop.permute.xlu0 %2152
        %2154 = vrot.lane.b32.xlu0 %v2120, 96
        %v2155 = vpop.permute.xlu0 %2154
        %2156 = vrot.lane.b32.xlu0 %v2121, 96
        %v2157 = vpop.permute.xlu0 %2156
        %2158 = vrot.lane.b32.xlu0 %v2122, 96
        %v2159 = vpop.permute.xlu0 %2158
        %2160 = vrot.lane.b32.xlu0 %v2123, 96
        %v2161 = vpop.permute.xlu0 %2160
        %2162 = vrot.lane.b32.xlu0 %v2124, 96
        %v2163 = vpop.permute.xlu0 %2162
        %2164 = vrot.lane.b32.xlu0 %v2125, 96
        %v2165 = vpop.permute.xlu0 %2164
        %2166 = vrot.lane.b32.xlu0 %v2126, 96
        %v2167 = vpop.permute.xlu0 %2166
        %2168 = vrot.lane.b32.xlu0 %v2127, 96
        %v2169 = vpop.permute.xlu0 %2168
        %2170 = vrot.lane.b32.xlu0 %v2128, 96
        %v2171 = vpop.permute.xlu0 %2170
        %2172 = vrot.lane.b32.xlu0 %v2129, 96
        %v2173 = vpop.permute.xlu0 %2172
        %2174 = vrot.lane.b32.xlu0 %v2130, 96
        %v2175 = vpop.permute.xlu0 %2174
        %2176 = vrot.lane.b32.xlu0 %v2131, 96
        %v2177 = vpop.permute.xlu0 %2176
        %2178 = vrot.lane.b32.xlu0 %v2132, 96
        %v2179 = vpop.permute.xlu0 %2178
        %2180 = vrot.lane.b32.xlu0 %v2133, 96
        %v2181 = vpop.permute.xlu0 %2180
        %v2198 = vadd.f32 %v1992, %v2151
        %v2199 = vadd.f32 %v1997, %v2153
        %v2200 = vadd.f32 %v2002, %v2155
        %v2201 = vadd.f32 %v2007, %v2157
        %v2202 = vadd.f32 %v2012, %v2159
        %v2203 = vadd.f32 %v2017, %v2161
        %v2204 = vadd.f32 %v2022, %v2163
        %v2205 = vadd.f32 %v2027, %v2165
        %v2206 = vadd.f32 %v2032, %v2167
        %v2207 = vadd.f32 %v2037, %v2169
        %v2208 = vadd.f32 %v2042, %v2171
        %v2209 = vadd.f32 %v2047, %v2173
        %v2210 = vadd.f32 %v2052, %v2175
        %v2211 = vadd.f32 %v2057, %v2177
        %v2212 = vadd.f32 %v2062, %v2179
        %v2213 = vadd.f32 %v2067, %v2181
        %2230 = vrot.lane.b32.xlu0 %v2198, 32
        %v2231 = vpop.permute.xlu0 %2230
        %2232 = vrot.lane.b32.xlu0 %v2199, 32
        %v2233 = vpop.permute.xlu0 %2232
        %2234 = vrot.lane.b32.xlu0 %v2200, 32
        %v2235 = vpop.permute.xlu0 %2234
        %2236 = vrot.lane.b32.xlu0 %v2201, 32
        %v2237 = vpop.permute.xlu0 %2236
        %2238 = vrot.lane.b32.xlu0 %v2202, 32
        %v2239 = vpop.permute.xlu0 %2238
        %2240 = vrot.lane.b32.xlu0 %v2203, 32
        %v2241 = vpop.permute.xlu0 %2240
        %2242 = vrot.lane.b32.xlu0 %v2204, 32
        %v2243 = vpop.permute.xlu0 %2242
        %2244 = vrot.lane.b32.xlu0 %v2205, 32
        %v2245 = vpop.permute.xlu0 %2244
        %2246 = vrot.lane.b32.xlu0 %v2206, 32
        %v2247 = vpop.permute.xlu0 %2246
        %2248 = vrot.lane.b32.xlu0 %v2207, 32
        %v2249 = vpop.permute.xlu0 %2248
        %2250 = vrot.lane.b32.xlu0 %v2208, 32
        %v2251 = vpop.permute.xlu0 %2250
        %2252 = vrot.lane.b32.xlu0 %v2209, 32
        %v2253 = vpop.permute.xlu0 %2252
        %2254 = vrot.lane.b32.xlu0 %v2210, 32
        %v2255 = vpop.permute.xlu0 %2254
        %2256 = vrot.lane.b32.xlu0 %v2211, 32
        %v2257 = vpop.permute.xlu0 %2256
        %2258 = vrot.lane.b32.xlu0 %v2212, 32
        %v2259 = vpop.permute.xlu0 %2258
        %2260 = vrot.lane.b32.xlu0 %v2213, 32
        %v2261 = vpop.permute.xlu0 %2260
        %vm2278 = vcmask 523520
        %2279 = vst.msk [vmem:[%s345] sm:$0xff] %vm2278, %v2231
        %2280 = vst.msk [vmem:[%s345 + $0x8] sm:$0xff] %vm2278, %v2233
        %2281 = vst.msk [vmem:[%s345 + $0x10] sm:$0xff] %vm2278, %v2235
        %2282 = vst.msk [vmem:[%s345 + $0x18] sm:$0xff] %vm2278, %v2237
        %2283 = vst.msk [vmem:[%s345 + $0x20] sm:$0xff] %vm2278, %v2239
        %2284 = vst.msk [vmem:[%s345 + $0x28] sm:$0xff] %vm2278, %v2241
        %2285 = vst.msk [vmem:[%s345 + $0x30] sm:$0xff] %vm2278, %v2243
        %2286 = vst.msk [vmem:[%s345 + $0x38] sm:$0xff] %vm2278, %v2245
        %2287 = vst.msk [vmem:[%s345 + $0x40] sm:$0xff] %vm2278, %v2247
        %2288 = vst.msk [vmem:[%s345 + $0x48] sm:$0xff] %vm2278, %v2249
        %2289 = vst.msk [vmem:[%s345 + $0x50] sm:$0xff] %vm2278, %v2251
        %2290 = vst.msk [vmem:[%s345 + $0x58] sm:$0xff] %vm2278, %v2253
        %2291 = vst.msk [vmem:[%s345 + $0x60] sm:$0xff] %vm2278, %v2255
        %2292 = vst.msk [vmem:[%s345 + $0x68] sm:$0xff] %vm2278, %v2257
        %2293 = vst.msk [vmem:[%s345 + $0x70] sm:$0xff] %vm2278, %v2259
        %2294 = vst.msk [vmem:[%s345 + $0x78] sm:$0xff] %vm2278, %v2261
        %s2295 = sand.u32 %s155, 1
        %s2296 = sand.u32 %s155, 1
        %s2297 = smul.addr %s2296, 128
        %s2298 = scalar_lea.vmem [#allocation3], %s2297
        // Predicated region
        $region79: #{skip_upsample_forward.1} parent=73 // pred_check
          %p2299 = pneg %p165
        $region80: #{skip_upsample_forward.1} parent=73 // pred_check_branch
          %2301 = sbr.rel (%p2299) target = $region82
        $region81: #{skip_upsample_forward.1} parent=73 // pred_region
          %s2302 = smul.addr %s20, 32
          %s2303 = sadd.s32 %s21, %s2302
          %s2304 = smul.addr %s2303, 8
          %s2305 = scalar_lea.vmem %s5, %s2304
          // Predicated region
          $region83: #{skip_upsample_forward.1} parent=81 // pred_check
            _
          $region84: #{skip_upsample_forward.1} parent=81 // pred_check_branch
            %2307 = sbr.rel (0) target = $region86
          $region85: #{skip_upsample_forward.1} parent=81 // pred_region
            // Predicated region
            $region87: #{skip_upsample_forward.1} parent=85 // pred_check
              _
            $region88: #{skip_upsample_forward.1} parent=85 // pred_check_branch
              %2309 = sbr.rel (0) target = $region90
            $region89: #{skip_upsample_forward.1} parent=85 // pred_region
              // Predicated region
              $region102: #{skip_upsample_forward.1} parent=89 // pred_check
                _
              $region103: #{skip_upsample_forward.1} parent=89 // pred_check_branch
                %2354 = sbr.rel (0) target = $region105
              $region104: #{skip_upsample_forward.1} parent=89 // pred_region
                loop: start=0, step=1, limit=1
                $region106: #{skip_upsample_forward.1} parent=104 // loop_pre_header
                  _
                $region107: #{skip_upsample_forward.1} parent=104 // loop_header
                  %s2356 = sphi 0, %s2360
                  %p2357 = scmp.ge.s32.totalorder %s2356, 1
                  %s2361 = sphi %s2298, %s2298
                  %s2362 = sphi %s2305, %s2305
                $region108: #{skip_upsample_forward.1} parent=104 // loop_header_branch
                  %2359 = sbr.rel (%p2357) target = $region112
                $region109: #{skip_upsample_forward.1} parent=104 // loop_body
                  %v2363 = vld [vmem:[%s2361] sm:$0xff]
                  %2364 = vst [vmem:[%s2362] sm:$0xff] %v2363
                  %v2365 = vld [vmem:[%s2361 + $0x8] sm:$0xff]
                  %2366 = vst [vmem:[%s2362 + $0x10] sm:$0xff] %v2365
                  %v2367 = vld [vmem:[%s2361 + $0x10] sm:$0xff]
                  %2368 = vst [vmem:[%s2362 + $0x20] sm:$0xff] %v2367
                  %v2369 = vld [vmem:[%s2361 + $0x18] sm:$0xff]
                  %2370 = vst [vmem:[%s2362 + $0x30] sm:$0xff] %v2369
                  %v2371 = vld [vmem:[%s2361 + $0x20] sm:$0xff]
                  %2372 = vst [vmem:[%s2362 + $0x40] sm:$0xff] %v2371
                  %v2373 = vld [vmem:[%s2361 + $0x28] sm:$0xff]
                  %2374 = vst [vmem:[%s2362 + $0x50] sm:$0xff] %v2373
                  %v2375 = vld [vmem:[%s2361 + $0x30] sm:$0xff]
                  %2376 = vst [vmem:[%s2362 + $0x60] sm:$0xff] %v2375
                  %v2377 = vld [vmem:[%s2361 + $0x38] sm:$0xff]
                  %2378 = vst [vmem:[%s2362 + $0x70] sm:$0xff] %v2377
                  %v2379 = vld [vmem:[%s2361 + $0x40] sm:$0xff]
                  %2380 = vst [vmem:[%s2362 + $0x80] sm:$0xff] %v2379
                  %v2381 = vld [vmem:[%s2361 + $0x48] sm:$0xff]
                  %2382 = vst [vmem:[%s2362 + $0x90] sm:$0xff] %v2381
                  %v2383 = vld [vmem:[%s2361 + $0x50] sm:$0xff]
                  %2384 = vst [vmem:[%s2362 + $0xa0] sm:$0xff] %v2383
                  %v2385 = vld [vmem:[%s2361 + $0x58] sm:$0xff]
                  %2386 = vst [vmem:[%s2362 + $0xb0] sm:$0xff] %v2385
                  %v2387 = vld [vmem:[%s2361 + $0x60] sm:$0xff]
                  %2388 = vst [vmem:[%s2362 + $0xc0] sm:$0xff] %v2387
                  %v2389 = vld [vmem:[%s2361 + $0x68] sm:$0xff]
                  %2390 = vst [vmem:[%s2362 + $0xd0] sm:$0xff] %v2389
                  %v2391 = vld [vmem:[%s2361 + $0x70] sm:$0xff]
                  %2392 = vst [vmem:[%s2362 + $0xe0] sm:$0xff] %v2391
                  %v2393 = vld [vmem:[%s2361 + $0x78] sm:$0xff]
                  %2394 = vst [vmem:[%s2362 + $0xf0] sm:$0xff] %v2393
                $region110: #{skip_upsample_forward.1} parent=104 // loop_footer
                  %s2360 = sadd.s32 1, %s2356
                $region111: #{skip_upsample_forward.1} parent=104 // loop_footer_branch
                  %2355 = sbr.rel target = $region107
                $region112: #{skip_upsample_forward.1} parent=104 // loop_exit
                  _
              $region105: #{skip_upsample_forward.1} parent=89 // pred_fallthru
                _
              // Predicated region
              $region113: #{skip_upsample_forward.1} parent=89 // pred_check
                _
              $region114: #{skip_upsample_forward.1} parent=89 // pred_check_branch
                %2396 = sbr.rel target = $region116
              $region115: #{skip_upsample_forward.1} parent=89 // pred_region
                _
              $region116: #{skip_upsample_forward.1} parent=89 // pred_fallthru
                _
            $region90: #{skip_upsample_forward.1} parent=85 // pred_fallthru
              _
            // Predicated region
            $region91: #{skip_upsample_forward.1} parent=85 // pred_check
              _
            $region92: #{skip_upsample_forward.1} parent=85 // pred_check_branch
              %2311 = sbr.rel target = $region94
            $region93: #{skip_upsample_forward.1} parent=85 // pred_region
              loop: start=0, step=1, limit=1
              $region95: #{skip_upsample_forward.1} parent=93 // loop_pre_header
                _
              $region96: #{skip_upsample_forward.1} parent=93 // loop_header
                %s2314 = sphi 0, %s2318
                %p2315 = scmp.ge.s32.totalorder %s2314, 1
                %s2319 = sphi %s2298, %s2298
                %s2320 = sphi %s2305, %s2305
              $region97: #{skip_upsample_forward.1} parent=93 // loop_header_branch
                %2317 = sbr.rel (%p2315) target = $region101
              $region98: #{skip_upsample_forward.1} parent=93 // loop_body
                %v2321 = vld [vmem:[%s2319] sm:$0xff]
                %2322 = vst [vmem:[%s2320] sm:$0xff] %v2321
                %v2323 = vld [vmem:[%s2319 + $0x8] sm:$0xff]
                %2324 = vst [vmem:[%s2320 + $0x10] sm:$0xff] %v2323
                %v2325 = vld [vmem:[%s2319 + $0x10] sm:$0xff]
                %2326 = vst [vmem:[%s2320 + $0x20] sm:$0xff] %v2325
                %v2327 = vld [vmem:[%s2319 + $0x18] sm:$0xff]
                %2328 = vst [vmem:[%s2320 + $0x30] sm:$0xff] %v2327
                %v2329 = vld [vmem:[%s2319 + $0x20] sm:$0xff]
                %2330 = vst [vmem:[%s2320 + $0x40] sm:$0xff] %v2329
                %v2331 = vld [vmem:[%s2319 + $0x28] sm:$0xff]
                %2332 = vst [vmem:[%s2320 + $0x50] sm:$0xff] %v2331
                %v2333 = vld [vmem:[%s2319 + $0x30] sm:$0xff]
                %2334 = vst [vmem:[%s2320 + $0x60] sm:$0xff] %v2333
                %v2335 = vld [vmem:[%s2319 + $0x38] sm:$0xff]
                %2336 = vst [vmem:[%s2320 + $0x70] sm:$0xff] %v2335
                %v2337 = vld [vmem:[%s2319 + $0x40] sm:$0xff]
                %2338 = vst [vmem:[%s2320 + $0x80] sm:$0xff] %v2337
                %v2339 = vld [vmem:[%s2319 + $0x48] sm:$0xff]
                %2340 = vst [vmem:[%s2320 + $0x90] sm:$0xff] %v2339
                %v2341 = vld [vmem:[%s2319 + $0x50] sm:$0xff]
                %2342 = vst [vmem:[%s2320 + $0xa0] sm:$0xff] %v2341
                %v2343 = vld [vmem:[%s2319 + $0x58] sm:$0xff]
                %2344 = vst [vmem:[%s2320 + $0xb0] sm:$0xff] %v2343
                %v2345 = vld [vmem:[%s2319 + $0x60] sm:$0xff]
                %2346 = vst [vmem:[%s2320 + $0xc0] sm:$0xff] %v2345
                %v2347 = vld [vmem:[%s2319 + $0x68] sm:$0xff]
                %2348 = vst [vmem:[%s2320 + $0xd0] sm:$0xff] %v2347
                %v2349 = vld [vmem:[%s2319 + $0x70] sm:$0xff]
                %2350 = vst [vmem:[%s2320 + $0xe0] sm:$0xff] %v2349
                %v2351 = vld [vmem:[%s2319 + $0x78] sm:$0xff]
                %2352 = vst [vmem:[%s2320 + $0xf0] sm:$0xff] %v2351
              $region99: #{skip_upsample_forward.1} parent=93 // loop_footer
                %s2318 = sadd.s32 1, %s2314
              $region100: #{skip_upsample_forward.1} parent=93 // loop_footer_branch
                %2313 = sbr.rel target = $region96
              $region101: #{skip_upsample_forward.1} parent=93 // loop_exit
                _
            $region94: #{skip_upsample_forward.1} parent=85 // pred_fallthru
              _
          $region86: #{skip_upsample_forward.1} parent=81 // pred_fallthru
            _
          %2397 = vnop
        $region82: #{skip_upsample_forward.1} parent=73 // pred_fallthru
          _
      $region74: #{skip_upsample_forward.1} parent=5 // pred_fallthru
        _
      %p2398 = scmp.le.s32.totalorder 2, %s11
      // Predicated region
      $region117: #{skip_upsample_forward.1} parent=5 // pred_check
        %p2399 = pneg %p2398
      $region118: #{skip_upsample_forward.1} parent=5 // pred_check_branch
        %2401 = sbr.rel (%p2399) target = $region120
      $region119: #{skip_upsample_forward.1} parent=5 // pred_region
        %s2402 = ssub.s32 %s11, 2
        // Predicated region
        $region121: #{skip_upsample_forward.1} parent=119 // pred_check
          %p2403 = pneg %p171
        $region122: #{skip_upsample_forward.1} parent=119 // pred_check_branch
          %2405 = sbr.rel (%p2403) target = $region124
        $region123: #{skip_upsample_forward.1} parent=119 // pred_region
          %s2406 = sand.u32 %s156, 1
          %s2407 = sand.u32 %s156, 1
          %s2408 = smul.addr %s2407, 128
          %s2409 = scalar_lea.vmem [#allocation3], %s2408
        $region124: #{skip_upsample_forward.1} parent=119 // pred_fallthru
          _
      $region120: #{skip_upsample_forward.1} parent=5 // pred_fallthru
        _
    $region6: #{skip_upsample_forward.1} parent=1 // loop_footer
      %s15 = sadd.s32 1, %s11
    $region7: #{skip_upsample_forward.1} parent=1 // loop_footer_branch
      %10 = sbr.rel target = $region3
    $region8: #{skip_upsample_forward.1} parent=1 // loop_exit
      _

</llo_original>
